<compile_context>
chip_gen: v5e
topology: v5e:2x2
jax: 0.10.0
libtpu: 0.0.40
codegen_flags: <defaults>
</compile_context>

<pallas_src>
import functools

import jax
import jax.numpy as jnp
from jax import lax
from jax.experimental import pallas as pl
from jax.experimental.pallas import tpu as pltpu

LANE = 128


def _round_up(n, m):
    return (n + m - 1) // m * m


def midi_lm_kernel(x_ref, w_ih_ref, b_ref, w_hh_ref, w_ro_ref, b_ro_ref,
                   y_ref, hseq_ref, xproj_ref, *, batch):
    """Whole MIDILanguageModel forward in one kernel invocation.

    x_ref     : (T*B, in)          flattened inputs
    w_ih_ref  : (in, 4*h_pad)      W_ih^T, gate-column padded
    b_ref     : (1, 4*h_pad)       b_ih + b_hh, gate-column padded
    w_hh_ref  : (h_pad, 4*h_pad)   W_hh^T, padded
    w_ro_ref  : (h_pad, o_pad)     W_ro^T, padded
    b_ro_ref  : (1, o_pad)
    y_ref     : (T*B, o_pad)       logits output (padded lanes are zero)
    hseq_ref  : (T*B, h_pad)       h_seq output (== module's _act_list)
    xproj_ref : (T*B, 4*h_pad)     VMEM scratch for the hoisted input proj
    """
    tb = x_ref.shape[0]
    h_pad, _ = w_hh_ref.shape
    seq_len = tb // batch

    # ---- Prologue (once): hoisted input projection + bias at M = T*B ------
    xproj_ref[...] = (
        jnp.dot(x_ref[...], w_ih_ref[...], preferred_element_type=jnp.float32)
        + b_ref[...])

    w_hh = w_hh_ref[...]          # recurrent weight stays resident all loop

    def fast_sigmoid(z):
        # One EUP tanh per gate instead of exp + reciprocal.
        return 0.5 * jnp.tanh(0.5 * z) + 0.5

    # ---- Recurrence: h, c carried in vregs; per-step matmul K = h_pad -----
    def step(t, carry):
        h, c = carry                                   # (B, h_pad) f32
        row = t * batch
        gates = (jnp.dot(h, w_hh, preferred_element_type=jnp.float32)
                 + xproj_ref[pl.ds(row, batch), :])
        i = fast_sigmoid(gates[:, 0 * h_pad:1 * h_pad])
        f = fast_sigmoid(gates[:, 1 * h_pad:2 * h_pad])
        g = jnp.tanh(gates[:, 2 * h_pad:3 * h_pad])
        o = fast_sigmoid(gates[:, 3 * h_pad:4 * h_pad])
        c = f * c + i * g
        h = o * jnp.tanh(c)
        hseq_ref[pl.ds(row, batch), :] = h             # write-only store
        return h, c

    h0 = jnp.zeros((batch, h_pad), jnp.float32)
    c0 = jnp.zeros((batch, h_pad), jnp.float32)
    lax.fori_loop(0, seq_len, step, (h0, c0), unroll=seq_len <= 32)

    # ---- Epilogue (once): batched readout at M = T*B ----------------------
    y = (jnp.dot(hseq_ref[...], w_ro_ref[...],
                 preferred_element_type=jnp.float32)
         + b_ro_ref[...])
    y_ref[...] = y.astype(y_ref.dtype)


def pack_params(weight_ih, weight_hh, bias_ih, bias_hh, ro_weight, ro_bias,
                dtype=jnp.float32):
    """One-time parameter packing (hoisted out of the forward path).

    weight_ih: (4H, in)  weight_hh: (4H, H)  biases: (4H,)
    ro_weight: (O, H)    ro_bias:   (O,)

    Gate g lives in columns [g*h_pad, g*h_pad + H); padded gate columns have
    zero weight & bias, so i=f=o=0.5, g_cell=0 on padded lanes and (with c
    initialized to 0) padded h/c lanes stay exactly zero through the
    recurrence.  Zero W_ro rows keep them out of the logits.
    """
    four_h, in_size = weight_ih.shape
    hidden = four_h // 4
    out_size = ro_weight.shape[0]
    h_pad = _round_up(hidden, LANE)
    o_pad = _round_up(out_size, LANE)

    bias = bias_ih + bias_hh
    w_ih_p = jnp.zeros((in_size, 4 * h_pad), dtype)
    w_hh_p = jnp.zeros((h_pad, 4 * h_pad), dtype)
    b_p = jnp.zeros((1, 4 * h_pad), dtype)
    for g in range(4):
        rows = slice(g * hidden, (g + 1) * hidden)
        cols = slice(g * h_pad, g * h_pad + hidden)
        w_ih_p = w_ih_p.at[:, cols].set(weight_ih[rows, :].T.astype(dtype))
        w_hh_p = w_hh_p.at[:hidden, cols].set(weight_hh[rows, :].T.astype(dtype))
        b_p = b_p.at[0, cols].set(bias[rows].astype(dtype))

    w_ro_p = jnp.zeros((h_pad, o_pad), dtype).at[:hidden, :out_size].set(
        ro_weight.T.astype(dtype))
    b_ro_p = jnp.zeros((1, o_pad), dtype).at[0, :out_size].set(
        ro_bias.astype(dtype))
    return w_ih_p, b_p, w_hh_p, w_ro_p, b_ro_p


@functools.partial(jax.jit, static_argnames=("hidden_size", "out_size"))
def midi_lm_forward(x, w_ih_p, b_p, w_hh_p, w_ro_p, b_ro_p, *, hidden_size,
                    out_size):
    """(y, h_seq) = MIDILanguageModel.forward(x) in one pallas_call.

    x: (T, B, in)  ->  y: (T, B, out_size),  h_seq: (T, B, hidden_size)
    """
    seq_len, batch, in_size = x.shape
    h_pad, four_h_pad = w_hh_p.shape
    o_pad = w_ro_p.shape[1]
    tb = seq_len * batch

    x2d = x.reshape(tb, in_size)

    y2d, h2d = pl.pallas_call(
        functools.partial(midi_lm_kernel, batch=batch),
        out_shape=(
            jax.ShapeDtypeStruct((tb, o_pad), x.dtype),   # logits (padded)
            jax.ShapeDtypeStruct((tb, h_pad), x.dtype),   # h_seq  (padded)
        ),
        grid=(1,),
        in_specs=[
            pl.BlockSpec((tb, in_size), lambda i: (0, 0)),        # x
            pl.BlockSpec((in_size, four_h_pad), lambda i: (0, 0)),  # W_ih^T
            pl.BlockSpec((1, four_h_pad), lambda i: (0, 0)),        # bias
            pl.BlockSpec((h_pad, four_h_pad), lambda i: (0, 0)),    # W_hh^T
            pl.BlockSpec((h_pad, o_pad), lambda i: (0, 0)),         # W_ro^T
            pl.BlockSpec((1, o_pad), lambda i: (0, 0)),             # b_ro
        ],
        out_specs=[
            pl.BlockSpec((tb, o_pad), lambda i: (0, 0)),
            pl.BlockSpec((tb, h_pad), lambda i: (0, 0)),
        ],
        scratch_shapes=[
            pltpu.VMEM((tb, four_h_pad), jnp.float32),  # hoisted input proj
        ],
        compiler_params=pltpu.CompilerParams(
            dimension_semantics=("arbitrary",)),
    )(x2d, w_ih_p, b_p, w_hh_p, w_ro_p, b_ro_p)

    y = y2d.reshape(seq_len, batch, o_pad)[:, :, :out_size]
    h_seq = h2d.reshape(seq_len, batch, h_pad)[:, :, :hidden_size]
    return y, h_seq


def midi_lm_ref(x, weight_ih, weight_hh, bias_ih, bias_hh, ro_weight, ro_bias):
    """Pure-JAX reference mirroring the PyTorch module forward."""
    seq_len, batch, _ = x.shape
    hidden = weight_hh.shape[-1]
    h = jnp.zeros((batch, hidden), x.dtype)
    c = jnp.zeros((batch, hidden), x.dtype)
    hs = []
    for t in range(seq_len):
        gates = x[t] @ weight_ih.T + bias_ih + h @ weight_hh.T + bias_hh
        i = jax.nn.sigmoid(gates[:, 0 * hidden:1 * hidden])
        f = jax.nn.sigmoid(gates[:, 1 * hidden:2 * hidden])
        g = jnp.tanh(gates[:, 2 * hidden:3 * hidden])
        o = jax.nn.sigmoid(gates[:, 3 * hidden:4 * hidden])
        c = f * c + i * g
        h = o * jnp.tanh(c)
        hs.append(h)
    h_seq = jnp.stack(hs, axis=0)
    y = h_seq @ ro_weight.T + ro_bias
    return y, h_seq


if __name__ == "__main__":
    SEQ, B, IN, H, OUT = 12, 8, 16, 32, 96

    key = jax.random.PRNGKey(0)
    kx, k1, k2, k3, k4, k5, k6 = jax.random.split(key, 7)

    x = jax.random.normal(kx, (SEQ, B, IN), jnp.float32)
    weight_ih = 0.01 * jax.random.normal(k1, (4 * H, IN), jnp.float32)
    weight_hh = 0.01 * jax.random.normal(k2, (4 * H, H), jnp.float32)
    bias_ih = 0.01 * jax.random.normal(k3, (4 * H,), jnp.float32)
    bias_hh = 0.01 * jax.random.normal(k4, (4 * H,), jnp.float32)
    # Readout: xavier_normal_ weight (std = sqrt(2/(H+OUT))) + small bias.
    ro_weight = jnp.sqrt(2.0 / (H + OUT)) * jax.random.normal(
        k5, (OUT, H), jnp.float32)
    ro_bias = 0.01 * jax.random.normal(k6, (OUT,), jnp.float32)

    # One-time packing (model init, not per forward).
    w_ih_p, b_p, w_hh_p, w_ro_p, b_ro_p = pack_params(
        weight_ih, weight_hh, bias_ih, bias_hh, ro_weight, ro_bias)

    y, h_seq = midi_lm_forward(x, w_ih_p, b_p, w_hh_p, w_ro_p, b_ro_p,
                               hidden_size=H, out_size=OUT)
    y = jax.block_until_ready(y)
    h_seq = jax.block_until_ready(h_seq)

    y_ref, h_ref = midi_lm_ref(x, weight_ih, weight_hh, bias_ih, bias_hh,
                               ro_weight, ro_bias)

    assert y.shape == (SEQ, B, OUT), y.shape
    assert h_seq.shape == (SEQ, B, H), h_seq.shape
    err_y = float(jnp.max(jnp.abs(y - y_ref)))
    err_h = float(jnp.max(jnp.abs(h_seq - h_ref)))
    assert jnp.allclose(y, y_ref, atol=5e-4, rtol=5e-4), err_y
    assert jnp.allclose(h_seq, h_ref, atol=5e-4, rtol=5e-4), err_h

    print("KERNEL_OK")
</pallas_src>

<mosaic_0001>
module attributes {stable_mosaic.version = 11 : i64} {
  func.func @midi_lm_kernel(%arg0: i32, %arg1: memref<96x16xf32, #tpu.memory_space<vmem>>, %arg2: memref<16x512xf32, #tpu.memory_space<vmem>>, %arg3: memref<1x512xf32, #tpu.memory_space<vmem>>, %arg4: memref<128x512xf32, #tpu.memory_space<vmem>>, %arg5: memref<128x128xf32, #tpu.memory_space<vmem>>, %arg6: memref<1x128xf32, #tpu.memory_space<vmem>>, %arg7: memref<96x128xf32, #tpu.memory_space<vmem>>, %arg8: memref<96x128xf32, #tpu.memory_space<vmem>>, %arg9: memref<96x512xf32, #tpu.memory_space<vmem>>) attributes {dimension_semantics = [#tpu.dimension_semantics<arbitrary>], iteration_bounds = array<i64: 1>, scalar_prefetch = 0 : i64, scratch_operands = 1 : i64, tpu.core_type = #tpu.core_type<tc>, window_params = [{pipeline_mode = #tpu.pipeline_mode<synchronous>, transform_indices = @transform_0, window_bounds = array<i64: 96, 16>}, {pipeline_mode = #tpu.pipeline_mode<synchronous>, transform_indices = @transform_1, window_bounds = array<i64: 16, 512>}, {pipeline_mode = #tpu.pipeline_mode<synchronous>, transform_indices = @transform_2, window_bounds = array<i64: 1, 512>}, {pipeline_mode = #tpu.pipeline_mode<synchronous>, transform_indices = @transform_3, window_bounds = array<i64: 128, 512>}, {pipeline_mode = #tpu.pipeline_mode<synchronous>, transform_indices = @transform_4, window_bounds = array<i64: 128, 128>}, {pipeline_mode = #tpu.pipeline_mode<synchronous>, transform_indices = @transform_5, window_bounds = array<i64: 1, 128>}, {pipeline_mode = #tpu.pipeline_mode<synchronous>, transform_indices = @transform_6, window_bounds = array<i64: 96, 128>}, {pipeline_mode = #tpu.pipeline_mode<synchronous>, transform_indices = @transform_7, window_bounds = array<i64: 96, 128>}]} {
    %c0 = arith.constant 0 : index
    %c0_0 = arith.constant 0 : index
    %0 = vector.load %arg1[%c0, %c0_0] : memref<96x16xf32, #tpu.memory_space<vmem>>, vector<96x16xf32>
    %c0_1 = arith.constant 0 : index
    %c0_2 = arith.constant 0 : index
    %1 = vector.load %arg2[%c0_1, %c0_2] : memref<16x512xf32, #tpu.memory_space<vmem>>, vector<16x512xf32>
    %cst = arith.constant dense<0.000000e+00> : vector<96x512xf32>
    %2 = tpu.matmul %0, %1, %cst {dimension_numbers = #tpu.dot_dimension_numbers<[1], [0], [0], [1], [0, 0, 1, 1], [], []>} : vector<96x16xf32>, vector<16x512xf32>, vector<96x512xf32> -> vector<96x512xf32>
    %c0_3 = arith.constant 0 : index
    %c0_4 = arith.constant 0 : index
    %3 = vector.load %arg3[%c0_3, %c0_4] : memref<1x512xf32, #tpu.memory_space<vmem>>, vector<1x512xf32>
    %4 = vector.broadcast %3 : vector<1x512xf32> to vector<96x512xf32>
    %5 = arith.addf %2, %4 : vector<96x512xf32>
    %c0_5 = arith.constant 0 : index
    %c0_6 = arith.constant 0 : index
    %6 = vector.load %arg9[%c0_5, %c0_6] : memref<96x512xf32, #tpu.memory_space<vmem>>, vector<96x512xf32>
    tpu.vector_store %arg9[%c0_5, %c0_6], %5 {strides = array<i32>} : memref<96x512xf32, #tpu.memory_space<vmem>>, vector<96x512xf32>,
    %c0_7 = arith.constant 0 : index
    %c0_8 = arith.constant 0 : index
    %7 = vector.load %arg4[%c0_7, %c0_8] : memref<128x512xf32, #tpu.memory_space<vmem>>, vector<128x512xf32>
    %cst_9 = arith.constant 0.000000e+00 : f32
    %8 = vector.broadcast %cst_9 : f32 to vector<8x128xf32>
    %cst_10 = arith.constant 0.000000e+00 : f32
    %9 = vector.broadcast %cst_10 : f32 to vector<8x128xf32>
    %c0_i32 = arith.constant 0 : i32
    %c8_i32 = arith.constant 8 : i32
    %10 = arith.muli %c0_i32, %c8_i32 : i32
    %cst_11 = arith.constant dense<0.000000e+00> : vector<8x512xf32>
    %11 = tpu.matmul %8, %7, %cst_11 {dimension_numbers = #tpu.dot_dimension_numbers<[1], [0], [0], [1], [0, 0, 1, 1], [], []>} : vector<8x128xf32>, vector<128x512xf32>, vector<8x512xf32> -> vector<8x512xf32>
    %12 = arith.index_cast %10 : i32 to index
    %c0_12 = arith.constant 0 : index
    %13 = vector.load %arg9[%12, %c0_12] : memref<96x512xf32, #tpu.memory_space<vmem>>, vector<8x512xf32>
    %14 = arith.addf %11, %13 : vector<8x512xf32>
    %15 = vector.extract_strided_slice %14 {offsets = [0, 0], sizes = [8, 128], strides = [1, 1]} : vector<8x512xf32> to vector<8x128xf32>
    %cst_13 = arith.constant 5.000000e-01 : f32
    %16 = vector.broadcast %cst_13 : f32 to vector<8x128xf32>
    %17 = arith.mulf %16, %15 : vector<8x128xf32>
    %18 = math.tanh %17 : vector<8x128xf32>
    %cst_14 = arith.constant 5.000000e-01 : f32
    %19 = vector.broadcast %cst_14 : f32 to vector<8x128xf32>
    %20 = arith.mulf %19, %18 : vector<8x128xf32>
    %cst_15 = arith.constant 5.000000e-01 : f32
    %21 = vector.broadcast %cst_15 : f32 to vector<8x128xf32>
    %22 = arith.addf %20, %21 : vector<8x128xf32>
    %23 = vector.extract_strided_slice %14 {offsets = [0, 128], sizes = [8, 128], strides = [1, 1]} : vector<8x512xf32> to vector<8x128xf32>
    %cst_16 = arith.constant 5.000000e-01 : f32
    %24 = vector.broadcast %cst_16 : f32 to vector<8x128xf32>
    %25 = arith.mulf %24, %23 : vector<8x128xf32>
    %26 = math.tanh %25 : vector<8x128xf32>
    %cst_17 = arith.constant 5.000000e-01 : f32
    %27 = vector.broadcast %cst_17 : f32 to vector<8x128xf32>
    %28 = arith.mulf %27, %26 : vector<8x128xf32>
    %cst_18 = arith.constant 5.000000e-01 : f32
    %29 = vector.broadcast %cst_18 : f32 to vector<8x128xf32>
    %30 = arith.addf %28, %29 : vector<8x128xf32>
    %31 = vector.extract_strided_slice %14 {offsets = [0, 256], sizes = [8, 128], strides = [1, 1]} : vector<8x512xf32> to vector<8x128xf32>
    %32 = math.tanh %31 : vector<8x128xf32>
    %33 = vector.extract_strided_slice %14 {offsets = [0, 384], sizes = [8, 128], strides = [1, 1]} : vector<8x512xf32> to vector<8x128xf32>
    %cst_19 = arith.constant 5.000000e-01 : f32
    %34 = vector.broadcast %cst_19 : f32 to vector<8x128xf32>
    %35 = arith.mulf %34, %33 : vector<8x128xf32>
    %36 = math.tanh %35 : vector<8x128xf32>
    %cst_20 = arith.constant 5.000000e-01 : f32
    %37 = vector.broadcast %cst_20 : f32 to vector<8x128xf32>
    %38 = arith.mulf %37, %36 : vector<8x128xf32>
    %cst_21 = arith.constant 5.000000e-01 : f32
    %39 = vector.broadcast %cst_21 : f32 to vector<8x128xf32>
    %40 = arith.addf %38, %39 : vector<8x128xf32>
    %41 = arith.mulf %30, %9 : vector<8x128xf32>
    %42 = arith.mulf %22, %32 : vector<8x128xf32>
    %43 = arith.addf %41, %42 : vector<8x128xf32>
    %44 = math.tanh %43 : vector<8x128xf32>
    %45 = arith.mulf %40, %44 : vector<8x128xf32>
    %46 = arith.index_cast %10 : i32 to index
    %c0_22 = arith.constant 0 : index
    %47 = vector.load %arg8[%46, %c0_22] : memref<96x128xf32, #tpu.memory_space<vmem>>, vector<8x128xf32>
    tpu.vector_store %arg8[%46, %c0_22], %45 {strides = array<i32>} : memref<96x128xf32, #tpu.memory_space<vmem>>, vector<8x128xf32>,
    %c1_i32 = arith.constant 1 : i32
    %c8_i32_23 = arith.constant 8 : i32
    %48 = arith.muli %c1_i32, %c8_i32_23 : i32
    %cst_24 = arith.constant dense<0.000000e+00> : vector<8x512xf32>
    %49 = tpu.matmul %45, %7, %cst_24 {dimension_numbers = #tpu.dot_dimension_numbers<[1], [0], [0], [1], [0, 0, 1, 1], [], []>} : vector<8x128xf32>, vector<128x512xf32>, vector<8x512xf32> -> vector<8x512xf32>
    %50 = arith.index_cast %48 : i32 to index
    %c0_25 = arith.constant 0 : index
    %51 = vector.load %arg9[%50, %c0_25] : memref<96x512xf32, #tpu.memory_space<vmem>>, vector<8x512xf32>
    %52 = arith.addf %49, %51 : vector<8x512xf32>
    %53 = vector.extract_strided_slice %52 {offsets = [0, 0], sizes = [8, 128], strides = [1, 1]} : vector<8x512xf32> to vector<8x128xf32>
    %cst_26 = arith.constant 5.000000e-01 : f32
    %54 = vector.broadcast %cst_26 : f32 to vector<8x128xf32>
    %55 = arith.mulf %54, %53 : vector<8x128xf32>
    %56 = math.tanh %55 : vector<8x128xf32>
    %cst_27 = arith.constant 5.000000e-01 : f32
    %57 = vector.broadcast %cst_27 : f32 to vector<8x128xf32>
    %58 = arith.mulf %57, %56 : vector<8x128xf32>
    %cst_28 = arith.constant 5.000000e-01 : f32
    %59 = vector.broadcast %cst_28 : f32 to vector<8x128xf32>
    %60 = arith.addf %58, %59 : vector<8x128xf32>
    %61 = vector.extract_strided_slice %52 {offsets = [0, 128], sizes = [8, 128], strides = [1, 1]} : vector<8x512xf32> to vector<8x128xf32>
    %cst_29 = arith.constant 5.000000e-01 : f32
    %62 = vector.broadcast %cst_29 : f32 to vector<8x128xf32>
    %63 = arith.mulf %62, %61 : vector<8x128xf32>
    %64 = math.tanh %63 : vector<8x128xf32>
    %cst_30 = arith.constant 5.000000e-01 : f32
    %65 = vector.broadcast %cst_30 : f32 to vector<8x128xf32>
    %66 = arith.mulf %65, %64 : vector<8x128xf32>
    %cst_31 = arith.constant 5.000000e-01 : f32
    %67 = vector.broadcast %cst_31 : f32 to vector<8x128xf32>
    %68 = arith.addf %66, %67 : vector<8x128xf32>
    %69 = vector.extract_strided_slice %52 {offsets = [0, 256], sizes = [8, 128], strides = [1, 1]} : vector<8x512xf32> to vector<8x128xf32>
    %70 = math.tanh %69 : vector<8x128xf32>
    %71 = vector.extract_strided_slice %52 {offsets = [0, 384], sizes = [8, 128], strides = [1, 1]} : vector<8x512xf32> to vector<8x128xf32>
    %cst_32 = arith.constant 5.000000e-01 : f32
    %72 = vector.broadcast %cst_32 : f32 to vector<8x128xf32>
    %73 = arith.mulf %72, %71 : vector<8x128xf32>
    %74 = math.tanh %73 : vector<8x128xf32>
    %cst_33 = arith.constant 5.000000e-01 : f32
    %75 = vector.broadcast %cst_33 : f32 to vector<8x128xf32>
    %76 = arith.mulf %75, %74 : vector<8x128xf32>
    %cst_34 = arith.constant 5.000000e-01 : f32
    %77 = vector.broadcast %cst_34 : f32 to vector<8x128xf32>
    %78 = arith.addf %76, %77 : vector<8x128xf32>
    %79 = arith.mulf %68, %43 : vector<8x128xf32>
    %80 = arith.mulf %60, %70 : vector<8x128xf32>
    %81 = arith.addf %79, %80 : vector<8x128xf32>
    %82 = math.tanh %81 : vector<8x128xf32>
    %83 = arith.mulf %78, %82 : vector<8x128xf32>
    %84 = arith.index_cast %48 : i32 to index
    %c0_35 = arith.constant 0 : index
    %85 = vector.load %arg8[%84, %c0_35] : memref<96x128xf32, #tpu.memory_space<vmem>>, vector<8x128xf32>
    tpu.vector_store %arg8[%84, %c0_35], %83 {strides = array<i32>} : memref<96x128xf32, #tpu.memory_space<vmem>>, vector<8x128xf32>,
    %c2_i32 = arith.constant 2 : i32
    %c8_i32_36 = arith.constant 8 : i32
    %86 = arith.muli %c2_i32, %c8_i32_36 : i32
    %cst_37 = arith.constant dense<0.000000e+00> : vector<8x512xf32>
    %87 = tpu.matmul %83, %7, %cst_37 {dimension_numbers = #tpu.dot_dimension_numbers<[1], [0], [0], [1], [0, 0, 1, 1], [], []>} : vector<8x128xf32>, vector<128x512xf32>, vector<8x512xf32> -> vector<8x512xf32>
    %88 = arith.index_cast %86 : i32 to index
    %c0_38 = arith.constant 0 : index
    %89 = vector.load %arg9[%88, %c0_38] : memref<96x512xf32, #tpu.memory_space<vmem>>, vector<8x512xf32>
    %90 = arith.addf %87, %89 : vector<8x512xf32>
    %91 = vector.extract_strided_slice %90 {offsets = [0, 0], sizes = [8, 128], strides = [1, 1]} : vector<8x512xf32> to vector<8x128xf32>
    %cst_39 = arith.constant 5.000000e-01 : f32
    %92 = vector.broadcast %cst_39 : f32 to vector<8x128xf32>
    %93 = arith.mulf %92, %91 : vector<8x128xf32>
    %94 = math.tanh %93 : vector<8x128xf32>
    %cst_40 = arith.constant 5.000000e-01 : f32
    %95 = vector.broadcast %cst_40 : f32 to vector<8x128xf32>
    %96 = arith.mulf %95, %94 : vector<8x128xf32>
    %cst_41 = arith.constant 5.000000e-01 : f32
    %97 = vector.broadcast %cst_41 : f32 to vector<8x128xf32>
    %98 = arith.addf %96, %97 : vector<8x128xf32>
    %99 = vector.extract_strided_slice %90 {offsets = [0, 128], sizes = [8, 128], strides = [1, 1]} : vector<8x512xf32> to vector<8x128xf32>
    %cst_42 = arith.constant 5.000000e-01 : f32
    %100 = vector.broadcast %cst_42 : f32 to vector<8x128xf32>
    %101 = arith.mulf %100, %99 : vector<8x128xf32>
    %102 = math.tanh %101 : vector<8x128xf32>
    %cst_43 = arith.constant 5.000000e-01 : f32
    %103 = vector.broadcast %cst_43 : f32 to vector<8x128xf32>
    %104 = arith.mulf %103, %102 : vector<8x128xf32>
    %cst_44 = arith.constant 5.000000e-01 : f32
    %105 = vector.broadcast %cst_44 : f32 to vector<8x128xf32>
    %106 = arith.addf %104, %105 : vector<8x128xf32>
    %107 = vector.extract_strided_slice %90 {offsets = [0, 256], sizes = [8, 128], strides = [1, 1]} : vector<8x512xf32> to vector<8x128xf32>
    %108 = math.tanh %107 : vector<8x128xf32>
    %109 = vector.extract_strided_slice %90 {offsets = [0, 384], sizes = [8, 128], strides = [1, 1]} : vector<8x512xf32> to vector<8x128xf32>
    %cst_45 = arith.constant 5.000000e-01 : f32
    %110 = vector.broadcast %cst_45 : f32 to vector<8x128xf32>
    %111 = arith.mulf %110, %109 : vector<8x128xf32>
    %112 = math.tanh %111 : vector<8x128xf32>
    %cst_46 = arith.constant 5.000000e-01 : f32
    %113 = vector.broadcast %cst_46 : f32 to vector<8x128xf32>
    %114 = arith.mulf %113, %112 : vector<8x128xf32>
    %cst_47 = arith.constant 5.000000e-01 : f32
    %115 = vector.broadcast %cst_47 : f32 to vector<8x128xf32>
    %116 = arith.addf %114, %115 : vector<8x128xf32>
    %117 = arith.mulf %106, %81 : vector<8x128xf32>
    %118 = arith.mulf %98, %108 : vector<8x128xf32>
    %119 = arith.addf %117, %118 : vector<8x128xf32>
    %120 = math.tanh %119 : vector<8x128xf32>
    %121 = arith.mulf %116, %120 : vector<8x128xf32>
    %122 = arith.index_cast %86 : i32 to index
    %c0_48 = arith.constant 0 : index
    %123 = vector.load %arg8[%122, %c0_48] : memref<96x128xf32, #tpu.memory_space<vmem>>, vector<8x128xf32>
    tpu.vector_store %arg8[%122, %c0_48], %121 {strides = array<i32>} : memref<96x128xf32, #tpu.memory_space<vmem>>, vector<8x128xf32>,
    %c3_i32 = arith.constant 3 : i32
    %c8_i32_49 = arith.constant 8 : i32
    %124 = arith.muli %c3_i32, %c8_i32_49 : i32
    %cst_50 = arith.constant dense<0.000000e+00> : vector<8x512xf32>
    %125 = tpu.matmul %121, %7, %cst_50 {dimension_numbers = #tpu.dot_dimension_numbers<[1], [0], [0], [1], [0, 0, 1, 1], [], []>} : vector<8x128xf32>, vector<128x512xf32>, vector<8x512xf32> -> vector<8x512xf32>
    %126 = arith.index_cast %124 : i32 to index
    %c0_51 = arith.constant 0 : index
    %127 = vector.load %arg9[%126, %c0_51] : memref<96x512xf32, #tpu.memory_space<vmem>>, vector<8x512xf32>
    %128 = arith.addf %125, %127 : vector<8x512xf32>
    %129 = vector.extract_strided_slice %128 {offsets = [0, 0], sizes = [8, 128], strides = [1, 1]} : vector<8x512xf32> to vector<8x128xf32>
    %cst_52 = arith.constant 5.000000e-01 : f32
    %130 = vector.broadcast %cst_52 : f32 to vector<8x128xf32>
    %131 = arith.mulf %130, %129 : vector<8x128xf32>
    %132 = math.tanh %131 : vector<8x128xf32>
    %cst_53 = arith.constant 5.000000e-01 : f32
    %133 = vector.broadcast %cst_53 : f32 to vector<8x128xf32>
    %134 = arith.mulf %133, %132 : vector<8x128xf32>
    %cst_54 = arith.constant 5.000000e-01 : f32
    %135 = vector.broadcast %cst_54 : f32 to vector<8x128xf32>
    %136 = arith.addf %134, %135 : vector<8x128xf32>
    %137 = vector.extract_strided_slice %128 {offsets = [0, 128], sizes = [8, 128], strides = [1, 1]} : vector<8x512xf32> to vector<8x128xf32>
    %cst_55 = arith.constant 5.000000e-01 : f32
    %138 = vector.broadcast %cst_55 : f32 to vector<8x128xf32>
    %139 = arith.mulf %138, %137 : vector<8x128xf32>
    %140 = math.tanh %139 : vector<8x128xf32>
    %cst_56 = arith.constant 5.000000e-01 : f32
    %141 = vector.broadcast %cst_56 : f32 to vector<8x128xf32>
    %142 = arith.mulf %141, %140 : vector<8x128xf32>
    %cst_57 = arith.constant 5.000000e-01 : f32
    %143 = vector.broadcast %cst_57 : f32 to vector<8x128xf32>
    %144 = arith.addf %142, %143 : vector<8x128xf32>
    %145 = vector.extract_strided_slice %128 {offsets = [0, 256], sizes = [8, 128], strides = [1, 1]} : vector<8x512xf32> to vector<8x128xf32>
    %146 = math.tanh %145 : vector<8x128xf32>
    %147 = vector.extract_strided_slice %128 {offsets = [0, 384], sizes = [8, 128], strides = [1, 1]} : vector<8x512xf32> to vector<8x128xf32>
    %cst_58 = arith.constant 5.000000e-01 : f32
    %148 = vector.broadcast %cst_58 : f32 to vector<8x128xf32>
    %149 = arith.mulf %148, %147 : vector<8x128xf32>
    %150 = math.tanh %149 : vector<8x128xf32>
    %cst_59 = arith.constant 5.000000e-01 : f32
    %151 = vector.broadcast %cst_59 : f32 to vector<8x128xf32>
    %152 = arith.mulf %151, %150 : vector<8x128xf32>
    %cst_60 = arith.constant 5.000000e-01 : f32
    %153 = vector.broadcast %cst_60 : f32 to vector<8x128xf32>
    %154 = arith.addf %152, %153 : vector<8x128xf32>
    %155 = arith.mulf %144, %119 : vector<8x128xf32>
    %156 = arith.mulf %136, %146 : vector<8x128xf32>
    %157 = arith.addf %155, %156 : vector<8x128xf32>
    %158 = math.tanh %157 : vector<8x128xf32>
    %159 = arith.mulf %154, %158 : vector<8x128xf32>
    %160 = arith.index_cast %124 : i32 to index
    %c0_61 = arith.constant 0 : index
    %161 = vector.load %arg8[%160, %c0_61] : memref<96x128xf32, #tpu.memory_space<vmem>>, vector<8x128xf32>
    tpu.vector_store %arg8[%160, %c0_61], %159 {strides = array<i32>} : memref<96x128xf32, #tpu.memory_space<vmem>>, vector<8x128xf32>,
    %c4_i32 = arith.constant 4 : i32
    %c8_i32_62 = arith.constant 8 : i32
    %162 = arith.muli %c4_i32, %c8_i32_62 : i32
    %cst_63 = arith.constant dense<0.000000e+00> : vector<8x512xf32>
    %163 = tpu.matmul %159, %7, %cst_63 {dimension_numbers = #tpu.dot_dimension_numbers<[1], [0], [0], [1], [0, 0, 1, 1], [], []>} : vector<8x128xf32>, vector<128x512xf32>, vector<8x512xf32> -> vector<8x512xf32>
    %164 = arith.index_cast %162 : i32 to index
    %c0_64 = arith.constant 0 : index
    %165 = vector.load %arg9[%164, %c0_64] : memref<96x512xf32, #tpu.memory_space<vmem>>, vector<8x512xf32>
    %166 = arith.addf %163, %165 : vector<8x512xf32>
    %167 = vector.extract_strided_slice %166 {offsets = [0, 0], sizes = [8, 128], strides = [1, 1]} : vector<8x512xf32> to vector<8x128xf32>
    %cst_65 = arith.constant 5.000000e-01 : f32
    %168 = vector.broadcast %cst_65 : f32 to vector<8x128xf32>
    %169 = arith.mulf %168, %167 : vector<8x128xf32>
    %170 = math.tanh %169 : vector<8x128xf32>
    %cst_66 = arith.constant 5.000000e-01 : f32
    %171 = vector.broadcast %cst_66 : f32 to vector<8x128xf32>
    %172 = arith.mulf %171, %170 : vector<8x128xf32>
    %cst_67 = arith.constant 5.000000e-01 : f32
    %173 = vector.broadcast %cst_67 : f32 to vector<8x128xf32>
    %174 = arith.addf %172, %173 : vector<8x128xf32>
    %175 = vector.extract_strided_slice %166 {offsets = [0, 128], sizes = [8, 128], strides = [1, 1]} : vector<8x512xf32> to vector<8x128xf32>
    %cst_68 = arith.constant 5.000000e-01 : f32
    %176 = vector.broadcast %cst_68 : f32 to vector<8x128xf32>
    %177 = arith.mulf %176, %175 : vector<8x128xf32>
    %178 = math.tanh %177 : vector<8x128xf32>
    %cst_69 = arith.constant 5.000000e-01 : f32
    %179 = vector.broadcast %cst_69 : f32 to vector<8x128xf32>
    %180 = arith.mulf %179, %178 : vector<8x128xf32>
    %cst_70 = arith.constant 5.000000e-01 : f32
    %181 = vector.broadcast %cst_70 : f32 to vector<8x128xf32>
    %182 = arith.addf %180, %181 : vector<8x128xf32>
    %183 = vector.extract_strided_slice %166 {offsets = [0, 256], sizes = [8, 128], strides = [1, 1]} : vector<8x512xf32> to vector<8x128xf32>
    %184 = math.tanh %183 : vector<8x128xf32>
    %185 = vector.extract_strided_slice %166 {offsets = [0, 384], sizes = [8, 128], strides = [1, 1]} : vector<8x512xf32> to vector<8x128xf32>
    %cst_71 = arith.constant 5.000000e-01 : f32
    %186 = vector.broadcast %cst_71 : f32 to vector<8x128xf32>
    %187 = arith.mulf %186, %185 : vector<8x128xf32>
    %188 = math.tanh %187 : vector<8x128xf32>
    %cst_72 = arith.constant 5.000000e-01 : f32
    %189 = vector.broadcast %cst_72 : f32 to vector<8x128xf32>
    %190 = arith.mulf %189, %188 : vector<8x128xf32>
    %cst_73 = arith.constant 5.000000e-01 : f32
    %191 = vector.broadcast %cst_73 : f32 to vector<8x128xf32>
    %192 = arith.addf %190, %191 : vector<8x128xf32>
    %193 = arith.mulf %182, %157 : vector<8x128xf32>
    %194 = arith.mulf %174, %184 : vector<8x128xf32>
    %195 = arith.addf %193, %194 : vector<8x128xf32>
    %196 = math.tanh %195 : vector<8x128xf32>
    %197 = arith.mulf %192, %196 : vector<8x128xf32>
    %198 = arith.index_cast %162 : i32 to index
    %c0_74 = arith.constant 0 : index
    %199 = vector.load %arg8[%198, %c0_74] : memref<96x128xf32, #tpu.memory_space<vmem>>, vector<8x128xf32>
    tpu.vector_store %arg8[%198, %c0_74], %197 {strides = array<i32>} : memref<96x128xf32, #tpu.memory_space<vmem>>, vector<8x128xf32>,
    %c5_i32 = arith.constant 5 : i32
    %c8_i32_75 = arith.constant 8 : i32
    %200 = arith.muli %c5_i32, %c8_i32_75 : i32
    %cst_76 = arith.constant dense<0.000000e+00> : vector<8x512xf32>
    %201 = tpu.matmul %197, %7, %cst_76 {dimension_numbers = #tpu.dot_dimension_numbers<[1], [0], [0], [1], [0, 0, 1, 1], [], []>} : vector<8x128xf32>, vector<128x512xf32>, vector<8x512xf32> -> vector<8x512xf32>
    %202 = arith.index_cast %200 : i32 to index
    %c0_77 = arith.constant 0 : index
    %203 = vector.load %arg9[%202, %c0_77] : memref<96x512xf32, #tpu.memory_space<vmem>>, vector<8x512xf32>
    %204 = arith.addf %201, %203 : vector<8x512xf32>
    %205 = vector.extract_strided_slice %204 {offsets = [0, 0], sizes = [8, 128], strides = [1, 1]} : vector<8x512xf32> to vector<8x128xf32>
    %cst_78 = arith.constant 5.000000e-01 : f32
    %206 = vector.broadcast %cst_78 : f32 to vector<8x128xf32>
    %207 = arith.mulf %206, %205 : vector<8x128xf32>
    %208 = math.tanh %207 : vector<8x128xf32>
    %cst_79 = arith.constant 5.000000e-01 : f32
    %209 = vector.broadcast %cst_79 : f32 to vector<8x128xf32>
    %210 = arith.mulf %209, %208 : vector<8x128xf32>
    %cst_80 = arith.constant 5.000000e-01 : f32
    %211 = vector.broadcast %cst_80 : f32 to vector<8x128xf32>
    %212 = arith.addf %210, %211 : vector<8x128xf32>
    %213 = vector.extract_strided_slice %204 {offsets = [0, 128], sizes = [8, 128], strides = [1, 1]} : vector<8x512xf32> to vector<8x128xf32>
    %cst_81 = arith.constant 5.000000e-01 : f32
    %214 = vector.broadcast %cst_81 : f32 to vector<8x128xf32>
    %215 = arith.mulf %214, %213 : vector<8x128xf32>
    %216 = math.tanh %215 : vector<8x128xf32>
    %cst_82 = arith.constant 5.000000e-01 : f32
    %217 = vector.broadcast %cst_82 : f32 to vector<8x128xf32>
    %218 = arith.mulf %217, %216 : vector<8x128xf32>
    %cst_83 = arith.constant 5.000000e-01 : f32
    %219 = vector.broadcast %cst_83 : f32 to vector<8x128xf32>
    %220 = arith.addf %218, %219 : vector<8x128xf32>
    %221 = vector.extract_strided_slice %204 {offsets = [0, 256], sizes = [8, 128], strides = [1, 1]} : vector<8x512xf32> to vector<8x128xf32>
    %222 = math.tanh %221 : vector<8x128xf32>
    %223 = vector.extract_strided_slice %204 {offsets = [0, 384], sizes = [8, 128], strides = [1, 1]} : vector<8x512xf32> to vector<8x128xf32>
    %cst_84 = arith.constant 5.000000e-01 : f32
    %224 = vector.broadcast %cst_84 : f32 to vector<8x128xf32>
    %225 = arith.mulf %224, %223 : vector<8x128xf32>
    %226 = math.tanh %225 : vector<8x128xf32>
    %cst_85 = arith.constant 5.000000e-01 : f32
    %227 = vector.broadcast %cst_85 : f32 to vector<8x128xf32>
    %228 = arith.mulf %227, %226 : vector<8x128xf32>
    %cst_86 = arith.constant 5.000000e-01 : f32
    %229 = vector.broadcast %cst_86 : f32 to vector<8x128xf32>
    %230 = arith.addf %228, %229 : vector<8x128xf32>
    %231 = arith.mulf %220, %195 : vector<8x128xf32>
    %232 = arith.mulf %212, %222 : vector<8x128xf32>
    %233 = arith.addf %231, %232 : vector<8x128xf32>
    %234 = math.tanh %233 : vector<8x128xf32>
    %235 = arith.mulf %230, %234 : vector<8x128xf32>
    %236 = arith.index_cast %200 : i32 to index
    %c0_87 = arith.constant 0 : index
    %237 = vector.load %arg8[%236, %c0_87] : memref<96x128xf32, #tpu.memory_space<vmem>>, vector<8x128xf32>
    tpu.vector_store %arg8[%236, %c0_87], %235 {strides = array<i32>} : memref<96x128xf32, #tpu.memory_space<vmem>>, vector<8x128xf32>,
    %c6_i32 = arith.constant 6 : i32
    %c8_i32_88 = arith.constant 8 : i32
    %238 = arith.muli %c6_i32, %c8_i32_88 : i32
    %cst_89 = arith.constant dense<0.000000e+00> : vector<8x512xf32>
    %239 = tpu.matmul %235, %7, %cst_89 {dimension_numbers = #tpu.dot_dimension_numbers<[1], [0], [0], [1], [0, 0, 1, 1], [], []>} : vector<8x128xf32>, vector<128x512xf32>, vector<8x512xf32> -> vector<8x512xf32>
    %240 = arith.index_cast %238 : i32 to index
    %c0_90 = arith.constant 0 : index
    %241 = vector.load %arg9[%240, %c0_90] : memref<96x512xf32, #tpu.memory_space<vmem>>, vector<8x512xf32>
    %242 = arith.addf %239, %241 : vector<8x512xf32>
    %243 = vector.extract_strided_slice %242 {offsets = [0, 0], sizes = [8, 128], strides = [1, 1]} : vector<8x512xf32> to vector<8x128xf32>
    %cst_91 = arith.constant 5.000000e-01 : f32
    %244 = vector.broadcast %cst_91 : f32 to vector<8x128xf32>
    %245 = arith.mulf %244, %243 : vector<8x128xf32>
    %246 = math.tanh %245 : vector<8x128xf32>
    %cst_92 = arith.constant 5.000000e-01 : f32
    %247 = vector.broadcast %cst_92 : f32 to vector<8x128xf32>
    %248 = arith.mulf %247, %246 : vector<8x128xf32>
    %cst_93 = arith.constant 5.000000e-01 : f32
    %249 = vector.broadcast %cst_93 : f32 to vector<8x128xf32>
    %250 = arith.addf %248, %249 : vector<8x128xf32>
    %251 = vector.extract_strided_slice %242 {offsets = [0, 128], sizes = [8, 128], strides = [1, 1]} : vector<8x512xf32> to vector<8x128xf32>
    %cst_94 = arith.constant 5.000000e-01 : f32
    %252 = vector.broadcast %cst_94 : f32 to vector<8x128xf32>
    %253 = arith.mulf %252, %251 : vector<8x128xf32>
    %254 = math.tanh %253 : vector<8x128xf32>
    %cst_95 = arith.constant 5.000000e-01 : f32
    %255 = vector.broadcast %cst_95 : f32 to vector<8x128xf32>
    %256 = arith.mulf %255, %254 : vector<8x128xf32>
    %cst_96 = arith.constant 5.000000e-01 : f32
    %257 = vector.broadcast %cst_96 : f32 to vector<8x128xf32>
    %258 = arith.addf %256, %257 : vector<8x128xf32>
    %259 = vector.extract_strided_slice %242 {offsets = [0, 256], sizes = [8, 128], strides = [1, 1]} : vector<8x512xf32> to vector<8x128xf32>
    %260 = math.tanh %259 : vector<8x128xf32>
    %261 = vector.extract_strided_slice %242 {offsets = [0, 384], sizes = [8, 128], strides = [1, 1]} : vector<8x512xf32> to vector<8x128xf32>
    %cst_97 = arith.constant 5.000000e-01 : f32
    %262 = vector.broadcast %cst_97 : f32 to vector<8x128xf32>
    %263 = arith.mulf %262, %261 : vector<8x128xf32>
    %264 = math.tanh %263 : vector<8x128xf32>
    %cst_98 = arith.constant 5.000000e-01 : f32
    %265 = vector.broadcast %cst_98 : f32 to vector<8x128xf32>
    %266 = arith.mulf %265, %264 : vector<8x128xf32>
    %cst_99 = arith.constant 5.000000e-01 : f32
    %267 = vector.broadcast %cst_99 : f32 to vector<8x128xf32>
    %268 = arith.addf %266, %267 : vector<8x128xf32>
    %269 = arith.mulf %258, %233 : vector<8x128xf32>
    %270 = arith.mulf %250, %260 : vector<8x128xf32>
    %271 = arith.addf %269, %270 : vector<8x128xf32>
    %272 = math.tanh %271 : vector<8x128xf32>
    %273 = arith.mulf %268, %272 : vector<8x128xf32>
    %274 = arith.index_cast %238 : i32 to index
    %c0_100 = arith.constant 0 : index
    %275 = vector.load %arg8[%274, %c0_100] : memref<96x128xf32, #tpu.memory_space<vmem>>, vector<8x128xf32>
    tpu.vector_store %arg8[%274, %c0_100], %273 {strides = array<i32>} : memref<96x128xf32, #tpu.memory_space<vmem>>, vector<8x128xf32>,
    %c7_i32 = arith.constant 7 : i32
    %c8_i32_101 = arith.constant 8 : i32
    %276 = arith.muli %c7_i32, %c8_i32_101 : i32
    %cst_102 = arith.constant dense<0.000000e+00> : vector<8x512xf32>
    %277 = tpu.matmul %273, %7, %cst_102 {dimension_numbers = #tpu.dot_dimension_numbers<[1], [0], [0], [1], [0, 0, 1, 1], [], []>} : vector<8x128xf32>, vector<128x512xf32>, vector<8x512xf32> -> vector<8x512xf32>
    %278 = arith.index_cast %276 : i32 to index
    %c0_103 = arith.constant 0 : index
    %279 = vector.load %arg9[%278, %c0_103] : memref<96x512xf32, #tpu.memory_space<vmem>>, vector<8x512xf32>
    %280 = arith.addf %277, %279 : vector<8x512xf32>
    %281 = vector.extract_strided_slice %280 {offsets = [0, 0], sizes = [8, 128], strides = [1, 1]} : vector<8x512xf32> to vector<8x128xf32>
    %cst_104 = arith.constant 5.000000e-01 : f32
    %282 = vector.broadcast %cst_104 : f32 to vector<8x128xf32>
    %283 = arith.mulf %282, %281 : vector<8x128xf32>
    %284 = math.tanh %283 : vector<8x128xf32>
    %cst_105 = arith.constant 5.000000e-01 : f32
    %285 = vector.broadcast %cst_105 : f32 to vector<8x128xf32>
    %286 = arith.mulf %285, %284 : vector<8x128xf32>
    %cst_106 = arith.constant 5.000000e-01 : f32
    %287 = vector.broadcast %cst_106 : f32 to vector<8x128xf32>
    %288 = arith.addf %286, %287 : vector<8x128xf32>
    %289 = vector.extract_strided_slice %280 {offsets = [0, 128], sizes = [8, 128], strides = [1, 1]} : vector<8x512xf32> to vector<8x128xf32>
    %cst_107 = arith.constant 5.000000e-01 : f32
    %290 = vector.broadcast %cst_107 : f32 to vector<8x128xf32>
    %291 = arith.mulf %290, %289 : vector<8x128xf32>
    %292 = math.tanh %291 : vector<8x128xf32>
    %cst_108 = arith.constant 5.000000e-01 : f32
    %293 = vector.broadcast %cst_108 : f32 to vector<8x128xf32>
    %294 = arith.mulf %293, %292 : vector<8x128xf32>
    %cst_109 = arith.constant 5.000000e-01 : f32
    %295 = vector.broadcast %cst_109 : f32 to vector<8x128xf32>
    %296 = arith.addf %294, %295 : vector<8x128xf32>
    %297 = vector.extract_strided_slice %280 {offsets = [0, 256], sizes = [8, 128], strides = [1, 1]} : vector<8x512xf32> to vector<8x128xf32>
    %298 = math.tanh %297 : vector<8x128xf32>
    %299 = vector.extract_strided_slice %280 {offsets = [0, 384], sizes = [8, 128], strides = [1, 1]} : vector<8x512xf32> to vector<8x128xf32>
    %cst_110 = arith.constant 5.000000e-01 : f32
    %300 = vector.broadcast %cst_110 : f32 to vector<8x128xf32>
    %301 = arith.mulf %300, %299 : vector<8x128xf32>
    %302 = math.tanh %301 : vector<8x128xf32>
    %cst_111 = arith.constant 5.000000e-01 : f32
    %303 = vector.broadcast %cst_111 : f32 to vector<8x128xf32>
    %304 = arith.mulf %303, %302 : vector<8x128xf32>
    %cst_112 = arith.constant 5.000000e-01 : f32
    %305 = vector.broadcast %cst_112 : f32 to vector<8x128xf32>
    %306 = arith.addf %304, %305 : vector<8x128xf32>
    %307 = arith.mulf %296, %271 : vector<8x128xf32>
    %308 = arith.mulf %288, %298 : vector<8x128xf32>
    %309 = arith.addf %307, %308 : vector<8x128xf32>
    %310 = math.tanh %309 : vector<8x128xf32>
    %311 = arith.mulf %306, %310 : vector<8x128xf32>
    %312 = arith.index_cast %276 : i32 to index
    %c0_113 = arith.constant 0 : index
    %313 = vector.load %arg8[%312, %c0_113] : memref<96x128xf32, #tpu.memory_space<vmem>>, vector<8x128xf32>
    tpu.vector_store %arg8[%312, %c0_113], %311 {strides = array<i32>} : memref<96x128xf32, #tpu.memory_space<vmem>>, vector<8x128xf32>,
    %c8_i32_114 = arith.constant 8 : i32
    %c8_i32_115 = arith.constant 8 : i32
    %314 = arith.muli %c8_i32_114, %c8_i32_115 : i32
    %cst_116 = arith.constant dense<0.000000e+00> : vector<8x512xf32>
    %315 = tpu.matmul %311, %7, %cst_116 {dimension_numbers = #tpu.dot_dimension_numbers<[1], [0], [0], [1], [0, 0, 1, 1], [], []>} : vector<8x128xf32>, vector<128x512xf32>, vector<8x512xf32> -> vector<8x512xf32>
    %316 = arith.index_cast %314 : i32 to index
    %c0_117 = arith.constant 0 : index
    %317 = vector.load %arg9[%316, %c0_117] : memref<96x512xf32, #tpu.memory_space<vmem>>, vector<8x512xf32>
    %318 = arith.addf %315, %317 : vector<8x512xf32>
    %319 = vector.extract_strided_slice %318 {offsets = [0, 0], sizes = [8, 128], strides = [1, 1]} : vector<8x512xf32> to vector<8x128xf32>
    %cst_118 = arith.constant 5.000000e-01 : f32
    %320 = vector.broadcast %cst_118 : f32 to vector<8x128xf32>
    %321 = arith.mulf %320, %319 : vector<8x128xf32>
    %322 = math.tanh %321 : vector<8x128xf32>
    %cst_119 = arith.constant 5.000000e-01 : f32
    %323 = vector.broadcast %cst_119 : f32 to vector<8x128xf32>
    %324 = arith.mulf %323, %322 : vector<8x128xf32>
    %cst_120 = arith.constant 5.000000e-01 : f32
    %325 = vector.broadcast %cst_120 : f32 to vector<8x128xf32>
    %326 = arith.addf %324, %325 : vector<8x128xf32>
    %327 = vector.extract_strided_slice %318 {offsets = [0, 128], sizes = [8, 128], strides = [1, 1]} : vector<8x512xf32> to vector<8x128xf32>
    %cst_121 = arith.constant 5.000000e-01 : f32
    %328 = vector.broadcast %cst_121 : f32 to vector<8x128xf32>
    %329 = arith.mulf %328, %327 : vector<8x128xf32>
    %330 = math.tanh %329 : vector<8x128xf32>
    %cst_122 = arith.constant 5.000000e-01 : f32
    %331 = vector.broadcast %cst_122 : f32 to vector<8x128xf32>
    %332 = arith.mulf %331, %330 : vector<8x128xf32>
    %cst_123 = arith.constant 5.000000e-01 : f32
    %333 = vector.broadcast %cst_123 : f32 to vector<8x128xf32>
    %334 = arith.addf %332, %333 : vector<8x128xf32>
    %335 = vector.extract_strided_slice %318 {offsets = [0, 256], sizes = [8, 128], strides = [1, 1]} : vector<8x512xf32> to vector<8x128xf32>
    %336 = math.tanh %335 : vector<8x128xf32>
    %337 = vector.extract_strided_slice %318 {offsets = [0, 384], sizes = [8, 128], strides = [1, 1]} : vector<8x512xf32> to vector<8x128xf32>
    %cst_124 = arith.constant 5.000000e-01 : f32
    %338 = vector.broadcast %cst_124 : f32 to vector<8x128xf32>
    %339 = arith.mulf %338, %337 : vector<8x128xf32>
    %340 = math.tanh %339 : vector<8x128xf32>
    %cst_125 = arith.constant 5.000000e-01 : f32
    %341 = vector.broadcast %cst_125 : f32 to vector<8x128xf32>
    %342 = arith.mulf %341, %340 : vector<8x128xf32>
    %cst_126 = arith.constant 5.000000e-01 : f32
    %343 = vector.broadcast %cst_126 : f32 to vector<8x128xf32>
    %344 = arith.addf %342, %343 : vector<8x128xf32>
    %345 = arith.mulf %334, %309 : vector<8x128xf32>
    %346 = arith.mulf %326, %336 : vector<8x128xf32>
    %347 = arith.addf %345, %346 : vector<8x128xf32>
    %348 = math.tanh %347 : vector<8x128xf32>
    %349 = arith.mulf %344, %348 : vector<8x128xf32>
    %350 = arith.index_cast %314 : i32 to index
    %c0_127 = arith.constant 0 : index
    %351 = vector.load %arg8[%350, %c0_127] : memref<96x128xf32, #tpu.memory_space<vmem>>, vector<8x128xf32>
    tpu.vector_store %arg8[%350, %c0_127], %349 {strides = array<i32>} : memref<96x128xf32, #tpu.memory_space<vmem>>, vector<8x128xf32>,
    %c9_i32 = arith.constant 9 : i32
    %c8_i32_128 = arith.constant 8 : i32
    %352 = arith.muli %c9_i32, %c8_i32_128 : i32
    %cst_129 = arith.constant dense<0.000000e+00> : vector<8x512xf32>
    %353 = tpu.matmul %349, %7, %cst_129 {dimension_numbers = #tpu.dot_dimension_numbers<[1], [0], [0], [1], [0, 0, 1, 1], [], []>} : vector<8x128xf32>, vector<128x512xf32>, vector<8x512xf32> -> vector<8x512xf32>
    %354 = arith.index_cast %352 : i32 to index
    %c0_130 = arith.constant 0 : index
    %355 = vector.load %arg9[%354, %c0_130] : memref<96x512xf32, #tpu.memory_space<vmem>>, vector<8x512xf32>
    %356 = arith.addf %353, %355 : vector<8x512xf32>
    %357 = vector.extract_strided_slice %356 {offsets = [0, 0], sizes = [8, 128], strides = [1, 1]} : vector<8x512xf32> to vector<8x128xf32>
    %cst_131 = arith.constant 5.000000e-01 : f32
    %358 = vector.broadcast %cst_131 : f32 to vector<8x128xf32>
    %359 = arith.mulf %358, %357 : vector<8x128xf32>
    %360 = math.tanh %359 : vector<8x128xf32>
    %cst_132 = arith.constant 5.000000e-01 : f32
    %361 = vector.broadcast %cst_132 : f32 to vector<8x128xf32>
    %362 = arith.mulf %361, %360 : vector<8x128xf32>
    %cst_133 = arith.constant 5.000000e-01 : f32
    %363 = vector.broadcast %cst_133 : f32 to vector<8x128xf32>
    %364 = arith.addf %362, %363 : vector<8x128xf32>
    %365 = vector.extract_strided_slice %356 {offsets = [0, 128], sizes = [8, 128], strides = [1, 1]} : vector<8x512xf32> to vector<8x128xf32>
    %cst_134 = arith.constant 5.000000e-01 : f32
    %366 = vector.broadcast %cst_134 : f32 to vector<8x128xf32>
    %367 = arith.mulf %366, %365 : vector<8x128xf32>
    %368 = math.tanh %367 : vector<8x128xf32>
    %cst_135 = arith.constant 5.000000e-01 : f32
    %369 = vector.broadcast %cst_135 : f32 to vector<8x128xf32>
    %370 = arith.mulf %369, %368 : vector<8x128xf32>
    %cst_136 = arith.constant 5.000000e-01 : f32
    %371 = vector.broadcast %cst_136 : f32 to vector<8x128xf32>
    %372 = arith.addf %370, %371 : vector<8x128xf32>
    %373 = vector.extract_strided_slice %356 {offsets = [0, 256], sizes = [8, 128], strides = [1, 1]} : vector<8x512xf32> to vector<8x128xf32>
    %374 = math.tanh %373 : vector<8x128xf32>
    %375 = vector.extract_strided_slice %356 {offsets = [0, 384], sizes = [8, 128], strides = [1, 1]} : vector<8x512xf32> to vector<8x128xf32>
    %cst_137 = arith.constant 5.000000e-01 : f32
    %376 = vector.broadcast %cst_137 : f32 to vector<8x128xf32>
    %377 = arith.mulf %376, %375 : vector<8x128xf32>
    %378 = math.tanh %377 : vector<8x128xf32>
    %cst_138 = arith.constant 5.000000e-01 : f32
    %379 = vector.broadcast %cst_138 : f32 to vector<8x128xf32>
    %380 = arith.mulf %379, %378 : vector<8x128xf32>
    %cst_139 = arith.constant 5.000000e-01 : f32
    %381 = vector.broadcast %cst_139 : f32 to vector<8x128xf32>
    %382 = arith.addf %380, %381 : vector<8x128xf32>
    %383 = arith.mulf %372, %347 : vector<8x128xf32>
    %384 = arith.mulf %364, %374 : vector<8x128xf32>
    %385 = arith.addf %383, %384 : vector<8x128xf32>
    %386 = math.tanh %385 : vector<8x128xf32>
    %387 = arith.mulf %382, %386 : vector<8x128xf32>
    %388 = arith.index_cast %352 : i32 to index
    %c0_140 = arith.constant 0 : index
    %389 = vector.load %arg8[%388, %c0_140] : memref<96x128xf32, #tpu.memory_space<vmem>>, vector<8x128xf32>
    tpu.vector_store %arg8[%388, %c0_140], %387 {strides = array<i32>} : memref<96x128xf32, #tpu.memory_space<vmem>>, vector<8x128xf32>,
    %c10_i32 = arith.constant 10 : i32
    %c8_i32_141 = arith.constant 8 : i32
    %390 = arith.muli %c10_i32, %c8_i32_141 : i32
    %cst_142 = arith.constant dense<0.000000e+00> : vector<8x512xf32>
    %391 = tpu.matmul %387, %7, %cst_142 {dimension_numbers = #tpu.dot_dimension_numbers<[1], [0], [0], [1], [0, 0, 1, 1], [], []>} : vector<8x128xf32>, vector<128x512xf32>, vector<8x512xf32> -> vector<8x512xf32>
    %392 = arith.index_cast %390 : i32 to index
    %c0_143 = arith.constant 0 : index
    %393 = vector.load %arg9[%392, %c0_143] : memref<96x512xf32, #tpu.memory_space<vmem>>, vector<8x512xf32>
    %394 = arith.addf %391, %393 : vector<8x512xf32>
    %395 = vector.extract_strided_slice %394 {offsets = [0, 0], sizes = [8, 128], strides = [1, 1]} : vector<8x512xf32> to vector<8x128xf32>
    %cst_144 = arith.constant 5.000000e-01 : f32
    %396 = vector.broadcast %cst_144 : f32 to vector<8x128xf32>
    %397 = arith.mulf %396, %395 : vector<8x128xf32>
    %398 = math.tanh %397 : vector<8x128xf32>
    %cst_145 = arith.constant 5.000000e-01 : f32
    %399 = vector.broadcast %cst_145 : f32 to vector<8x128xf32>
    %400 = arith.mulf %399, %398 : vector<8x128xf32>
    %cst_146 = arith.constant 5.000000e-01 : f32
    %401 = vector.broadcast %cst_146 : f32 to vector<8x128xf32>
    %402 = arith.addf %400, %401 : vector<8x128xf32>
    %403 = vector.extract_strided_slice %394 {offsets = [0, 128], sizes = [8, 128], strides = [1, 1]} : vector<8x512xf32> to vector<8x128xf32>
    %cst_147 = arith.constant 5.000000e-01 : f32
    %404 = vector.broadcast %cst_147 : f32 to vector<8x128xf32>
    %405 = arith.mulf %404, %403 : vector<8x128xf32>
    %406 = math.tanh %405 : vector<8x128xf32>
    %cst_148 = arith.constant 5.000000e-01 : f32
    %407 = vector.broadcast %cst_148 : f32 to vector<8x128xf32>
    %408 = arith.mulf %407, %406 : vector<8x128xf32>
    %cst_149 = arith.constant 5.000000e-01 : f32
    %409 = vector.broadcast %cst_149 : f32 to vector<8x128xf32>
    %410 = arith.addf %408, %409 : vector<8x128xf32>
    %411 = vector.extract_strided_slice %394 {offsets = [0, 256], sizes = [8, 128], strides = [1, 1]} : vector<8x512xf32> to vector<8x128xf32>
    %412 = math.tanh %411 : vector<8x128xf32>
    %413 = vector.extract_strided_slice %394 {offsets = [0, 384], sizes = [8, 128], strides = [1, 1]} : vector<8x512xf32> to vector<8x128xf32>
    %cst_150 = arith.constant 5.000000e-01 : f32
    %414 = vector.broadcast %cst_150 : f32 to vector<8x128xf32>
    %415 = arith.mulf %414, %413 : vector<8x128xf32>
    %416 = math.tanh %415 : vector<8x128xf32>
    %cst_151 = arith.constant 5.000000e-01 : f32
    %417 = vector.broadcast %cst_151 : f32 to vector<8x128xf32>
    %418 = arith.mulf %417, %416 : vector<8x128xf32>
    %cst_152 = arith.constant 5.000000e-01 : f32
    %419 = vector.broadcast %cst_152 : f32 to vector<8x128xf32>
    %420 = arith.addf %418, %419 : vector<8x128xf32>
    %421 = arith.mulf %410, %385 : vector<8x128xf32>
    %422 = arith.mulf %402, %412 : vector<8x128xf32>
    %423 = arith.addf %421, %422 : vector<8x128xf32>
    %424 = math.tanh %423 : vector<8x128xf32>
    %425 = arith.mulf %420, %424 : vector<8x128xf32>
    %426 = arith.index_cast %390 : i32 to index
    %c0_153 = arith.constant 0 : index
    %427 = vector.load %arg8[%426, %c0_153] : memref<96x128xf32, #tpu.memory_space<vmem>>, vector<8x128xf32>
    tpu.vector_store %arg8[%426, %c0_153], %425 {strides = array<i32>} : memref<96x128xf32, #tpu.memory_space<vmem>>, vector<8x128xf32>,
    %c11_i32 = arith.constant 11 : i32
    %c8_i32_154 = arith.constant 8 : i32
    %428 = arith.muli %c11_i32, %c8_i32_154 : i32
    %cst_155 = arith.constant dense<0.000000e+00> : vector<8x512xf32>
    %429 = tpu.matmul %425, %7, %cst_155 {dimension_numbers = #tpu.dot_dimension_numbers<[1], [0], [0], [1], [0, 0, 1, 1], [], []>} : vector<8x128xf32>, vector<128x512xf32>, vector<8x512xf32> -> vector<8x512xf32>
    %430 = arith.index_cast %428 : i32 to index
    %c0_156 = arith.constant 0 : index
    %431 = vector.load %arg9[%430, %c0_156] : memref<96x512xf32, #tpu.memory_space<vmem>>, vector<8x512xf32>
    %432 = arith.addf %429, %431 : vector<8x512xf32>
    %433 = vector.extract_strided_slice %432 {offsets = [0, 0], sizes = [8, 128], strides = [1, 1]} : vector<8x512xf32> to vector<8x128xf32>
    %cst_157 = arith.constant 5.000000e-01 : f32
    %434 = vector.broadcast %cst_157 : f32 to vector<8x128xf32>
    %435 = arith.mulf %434, %433 : vector<8x128xf32>
    %436 = math.tanh %435 : vector<8x128xf32>
    %cst_158 = arith.constant 5.000000e-01 : f32
    %437 = vector.broadcast %cst_158 : f32 to vector<8x128xf32>
    %438 = arith.mulf %437, %436 : vector<8x128xf32>
    %cst_159 = arith.constant 5.000000e-01 : f32
    %439 = vector.broadcast %cst_159 : f32 to vector<8x128xf32>
    %440 = arith.addf %438, %439 : vector<8x128xf32>
    %441 = vector.extract_strided_slice %432 {offsets = [0, 128], sizes = [8, 128], strides = [1, 1]} : vector<8x512xf32> to vector<8x128xf32>
    %cst_160 = arith.constant 5.000000e-01 : f32
    %442 = vector.broadcast %cst_160 : f32 to vector<8x128xf32>
    %443 = arith.mulf %442, %441 : vector<8x128xf32>
    %444 = math.tanh %443 : vector<8x128xf32>
    %cst_161 = arith.constant 5.000000e-01 : f32
    %445 = vector.broadcast %cst_161 : f32 to vector<8x128xf32>
    %446 = arith.mulf %445, %444 : vector<8x128xf32>
    %cst_162 = arith.constant 5.000000e-01 : f32
    %447 = vector.broadcast %cst_162 : f32 to vector<8x128xf32>
    %448 = arith.addf %446, %447 : vector<8x128xf32>
    %449 = vector.extract_strided_slice %432 {offsets = [0, 256], sizes = [8, 128], strides = [1, 1]} : vector<8x512xf32> to vector<8x128xf32>
    %450 = math.tanh %449 : vector<8x128xf32>
    %451 = vector.extract_strided_slice %432 {offsets = [0, 384], sizes = [8, 128], strides = [1, 1]} : vector<8x512xf32> to vector<8x128xf32>
    %cst_163 = arith.constant 5.000000e-01 : f32
    %452 = vector.broadcast %cst_163 : f32 to vector<8x128xf32>
    %453 = arith.mulf %452, %451 : vector<8x128xf32>
    %454 = math.tanh %453 : vector<8x128xf32>
    %cst_164 = arith.constant 5.000000e-01 : f32
    %455 = vector.broadcast %cst_164 : f32 to vector<8x128xf32>
    %456 = arith.mulf %455, %454 : vector<8x128xf32>
    %cst_165 = arith.constant 5.000000e-01 : f32
    %457 = vector.broadcast %cst_165 : f32 to vector<8x128xf32>
    %458 = arith.addf %456, %457 : vector<8x128xf32>
    %459 = arith.mulf %448, %423 : vector<8x128xf32>
    %460 = arith.mulf %440, %450 : vector<8x128xf32>
    %461 = arith.addf %459, %460 : vector<8x128xf32>
    %462 = math.tanh %461 : vector<8x128xf32>
    %463 = arith.mulf %458, %462 : vector<8x128xf32>
    %464 = arith.index_cast %428 : i32 to index
    %c0_166 = arith.constant 0 : index
    %465 = vector.load %arg8[%464, %c0_166] : memref<96x128xf32, #tpu.memory_space<vmem>>, vector<8x128xf32>
    tpu.vector_store %arg8[%464, %c0_166], %463 {strides = array<i32>} : memref<96x128xf32, #tpu.memory_space<vmem>>, vector<8x128xf32>,
    %c12_i32 = arith.constant 12 : i32
    %c0_167 = arith.constant 0 : index
    %c0_168 = arith.constant 0 : index
    %466 = vector.load %arg8[%c0_167, %c0_168] : memref<96x128xf32, #tpu.memory_space<vmem>>, vector<96x128xf32>
    %c0_169 = arith.constant 0 : index
    %c0_170 = arith.constant 0 : index
    %467 = vector.load %arg5[%c0_169, %c0_170] : memref<128x128xf32, #tpu.memory_space<vmem>>, vector<128x128xf32>
    %cst_171 = arith.constant dense<0.000000e+00> : vector<96x128xf32>
    %468 = tpu.matmul %466, %467, %cst_171 {dimension_numbers = #tpu.dot_dimension_numbers<[1], [0], [0], [1], [0, 0, 1, 1], [], []>} : vector<96x128xf32>, vector<128x128xf32>, vector<96x128xf32> -> vector<96x128xf32>
    %c0_172 = arith.constant 0 : index
    %c0_173 = arith.constant 0 : index
    %469 = vector.load %arg6[%c0_172, %c0_173] : memref<1x128xf32, #tpu.memory_space<vmem>>, vector<1x128xf32>
    %470 = vector.broadcast %469 : vector<1x128xf32> to vector<96x128xf32>
    %471 = arith.addf %468, %470 : vector<96x128xf32>
    %c0_174 = arith.constant 0 : index
    %c0_175 = arith.constant 0 : index
    %472 = vector.load %arg7[%c0_174, %c0_175] : memref<96x128xf32, #tpu.memory_space<vmem>>, vector<96x128xf32>
    tpu.vector_store %arg7[%c0_174, %c0_175], %471 {strides = array<i32>} : memref<96x128xf32, #tpu.memory_space<vmem>>, vector<96x128xf32>,
    return
  }
  func.func @transform_0(%arg0: i32) -> (i32, i32) {
    %c0_i32 = arith.constant 0 : i32
    %c0_i32_0 = arith.constant 0 : i32
    %c0_i32_1 = arith.constant 0 : i32
    return %c0_i32, %c0_i32_0 : i32, i32
  }
  func.func @transform_1(%arg0: i32) -> (i32, i32) {
    %c0_i32 = arith.constant 0 : i32
    %c0_i32_0 = arith.constant 0 : i32
    %c0_i32_1 = arith.constant 0 : i32
    return %c0_i32, %c0_i32_0 : i32, i32
  }
  func.func @transform_2(%arg0: i32) -> (i32, i32) {
    %c0_i32 = arith.constant 0 : i32
    %c0_i32_0 = arith.constant 0 : i32
    %c0_i32_1 = arith.constant 0 : i32
    return %c0_i32, %c0_i32_0 : i32, i32
  }
  func.func @transform_3(%arg0: i32) -> (i32, i32) {
    %c0_i32 = arith.constant 0 : i32
    %c0_i32_0 = arith.constant 0 : i32
    %c0_i32_1 = arith.constant 0 : i32
    return %c0_i32, %c0_i32_0 : i32, i32
  }
  func.func @transform_4(%arg0: i32) -> (i32, i32) {
    %c0_i32 = arith.constant 0 : i32
    %c0_i32_0 = arith.constant 0 : i32
    %c0_i32_1 = arith.constant 0 : i32
    return %c0_i32, %c0_i32_0 : i32, i32
  }
  func.func @transform_5(%arg0: i32) -> (i32, i32) {
    %c0_i32 = arith.constant 0 : i32
    %c0_i32_0 = arith.constant 0 : i32
    %c0_i32_1 = arith.constant 0 : i32
    return %c0_i32, %c0_i32_0 : i32, i32
  }
  func.func @transform_6(%arg0: i32) -> (i32, i32) {
    %c0_i32 = arith.constant 0 : i32
    %c0_i32_0 = arith.constant 0 : i32
    %c0_i32_1 = arith.constant 0 : i32
    return %c0_i32, %c0_i32_0 : i32, i32
  }
  func.func @transform_7(%arg0: i32) -> (i32, i32) {
    %c0_i32 = arith.constant 0 : i32
    %c0_i32_0 = arith.constant 0 : i32
    %c0_i32_1 = arith.constant 0 : i32
    return %c0_i32, %c0_i32_0 : i32, i32
  }
}

</mosaic_0001>

<llo_original>
// kernel: midi_lm_forward.1
$region0: #{midi_lm_forward.1}
  #allocation0 [shape = 'u32[]', space=smem, size = 0x4, offset = 0x4, fixed_abs, tag = 'smem constant byte address 0x4 - core index']
  #allocation1 [shape = 'u32[72,128]{1,0:T(1,128)}', space=vmem, size = 0x9000, scoped, tag = 'internal scratch']
  #allocation2 [shape = 'f32[96,512]{1,0:T(8,128)}', space=vmem, size = 0x30000, scoped, tag = 'scratch operand']
  %s0 = inlined_call_operand.hbm [shape: f32[96,16], index: 0, kind: input, shape index: {}]
  %s1 = inlined_call_operand.hbm [shape: f32[16,512], index: 1, kind: input, shape index: {}]
  %s2 = inlined_call_operand.hbm [shape: f32[1,512], index: 2, kind: input, shape index: {}]
  %s3 = inlined_call_operand.hbm [shape: f32[128,512], index: 3, kind: input, shape index: {}]
  %s4 = inlined_call_operand.hbm [shape: f32[128,128], index: 4, kind: input, shape index: {}]
  %s5 = inlined_call_operand.vmem [shape: f32[1,128], index: 5, kind: input, shape index: {}]
  %s6 = inlined_call_operand.hbm [shape: f32[96,128], index: 6, kind: output, shape index: {0}]
  %s7 = inlined_call_operand.hbm [shape: f32[96,128], index: 7, kind: output, shape index: {1}]
  %8 = xla_tuple %s6, %s7
  %s9 = sld [smem:[#allocation0]]
  $region62: #{midi_lm_forward.1} parent=0
    _
  %s11 = ssub.s32 1, %s9
  %s12 = scalar_select 0, %s11, %s9
  $region1: #{midi_lm_forward.1} parent=0
    #allocation3 [shape = 'u8[49152]{0}', space=vmem, size = 0xc000, scoped, tag = 'input window, operand 0, single buffered']
    #allocation4 [shape = 's32[1]{0}', space=sflag, size = 0x4, scoped, tag = 'scoped memory for midi_lm_forward.1']
    #allocation5 [shape = 's32[1]{0}', space=sflag, size = 0x4, scoped, tag = 'scoped memory for midi_lm_forward.1']
    #allocation6 [shape = 'u8[32768]{0}', space=vmem, size = 0x8000, scoped, tag = 'input window, operand 1, single buffered']
    #allocation7 [shape = 's32[1]{0}', space=sflag, size = 0x4, scoped, tag = 'scoped memory for midi_lm_forward.1']
    #allocation8 [shape = 'u8[2048]{0}', space=vmem, size = 0x800, scoped, tag = 'input window, operand 2, single buffered']
    #allocation9 [shape = 'u8[262144]{0}', space=vmem, size = 0x40000, scoped, tag = 'input window, operand 3, single buffered']
    #allocation10 [shape = 's32[1]{0}', space=sflag, size = 0x4, scoped, tag = 'scoped memory for midi_lm_forward.1']
    #allocation11 [shape = 'u8[65536]{0}', space=vmem, size = 0x10000, scoped, tag = 'input window, operand 4, single buffered']
    #allocation12 [shape = 'u8[49152]{0}', space=vmem, size = 0xc000, scoped, tag = 'output window, operand 0, single buffered']
    #allocation13 [shape = 'u8[49152]{0}', space=vmem, size = 0xc000, scoped, tag = 'output window, operand 1, single buffered']
    #allocation14 [shape = 's32[1]{0}', space=sflag, size = 0x4, scoped, tag = 'scoped memory for midi_lm_forward.1']
    %13 = vsyncpa [#allocation4], 0
    %14 = vsyncpa [#allocation7], 0
    %15 = vsyncpa [#allocation10], 0
    %16 = vsyncpa [#allocation5], 0
    %17 = vsyncpa [#allocation14], 0
    // Predicated region
    $region2: #{midi_lm_forward.1} parent=1 // pred_check
      _
    $region3: #{midi_lm_forward.1} parent=1 // pred_check_branch
      %19 = sbr.rel (0) target = $region5
    $region4: #{midi_lm_forward.1} parent=1 // pred_region
      %21 = vsyncadd [#allocation4], 0
      %s22 = sshll.u32 %s0, 4
      %s23 = int_to_ptr.hbm [resolvable:$true] %s22
      %s24 = sshll.u32 [#allocation3], 4
      %s25 = int_to_ptr.vmem [resolvable:$true] %s24
      %30 = dma.hbm_to_vmem [thread:$0]  %s23, 1536, %s25, [#allocation4], 128, 128, 8
    $region5: #{midi_lm_forward.1} parent=1 // pred_fallthru
      _
    // Predicated region
    $region6: #{midi_lm_forward.1} parent=1 // pred_check
      _
    $region7: #{midi_lm_forward.1} parent=1 // pred_check_branch
      %32 = sbr.rel (0) target = $region9
    $region8: #{midi_lm_forward.1} parent=1 // pred_region
      %34 = vsyncadd [#allocation7], 0
      %s35 = sshll.u32 %s1, 4
      %s36 = int_to_ptr.hbm [resolvable:$true] %s35
      %s37 = sshll.u32 [#allocation6], 4
      %s38 = int_to_ptr.vmem [resolvable:$true] %s37
      %43 = dma.hbm_to_vmem [thread:$0]  %s36, 1024, %s38, [#allocation7], 512, 512, 32
    $region9: #{midi_lm_forward.1} parent=1 // pred_fallthru
      _
    // Predicated region
    $region10: #{midi_lm_forward.1} parent=1 // pred_check
      _
    $region11: #{midi_lm_forward.1} parent=1 // pred_check_branch
      %45 = sbr.rel (0) target = $region13
    $region12: #{midi_lm_forward.1} parent=1 // pred_region
      %47 = vsyncadd [#allocation7], 0
      %s49 = sshll.u32 %s2, 4
      %s50 = int_to_ptr.hbm [resolvable:$true] %s49
      %s51 = sshll.u32 [#allocation8], 4
      %s52 = int_to_ptr.vmem [resolvable:$true] %s51
      %54 = dma.hbm_to_vmem [thread:$0]  %s50, 64, %s52, [#allocation7]
    $region13: #{midi_lm_forward.1} parent=1 // pred_fallthru
      _
    // Predicated region
    $region14: #{midi_lm_forward.1} parent=1 // pred_check
      _
    $region15: #{midi_lm_forward.1} parent=1 // pred_check_branch
      %56 = sbr.rel (0) target = $region17
    $region16: #{midi_lm_forward.1} parent=1 // pred_region
      %58 = vsyncadd [#allocation10], 0
      %s59 = sshll.u32 %s3, 4
      %s60 = int_to_ptr.hbm [resolvable:$true] %s59
      %s61 = sshll.u32 [#allocation9], 4
      %s62 = int_to_ptr.vmem [resolvable:$true] %s61
      %67 = dma.hbm_to_vmem [thread:$0]  %s60, 8192, %s62, [#allocation10], 512, 512, 32
    $region17: #{midi_lm_forward.1} parent=1 // pred_fallthru
      _
    // Predicated region
    $region18: #{midi_lm_forward.1} parent=1 // pred_check
      _
    $region19: #{midi_lm_forward.1} parent=1 // pred_check_branch
      %69 = sbr.rel (0) target = $region21
    $region20: #{midi_lm_forward.1} parent=1 // pred_region
      %71 = vsyncadd [#allocation10], 0
      %s72 = sshll.u32 %s4, 4
      %s73 = int_to_ptr.hbm [resolvable:$true] %s72
      %s74 = sshll.u32 [#allocation11], 4
      %s75 = int_to_ptr.vmem [resolvable:$true] %s74
      %80 = dma.hbm_to_vmem [thread:$0]  %s73, 2048, %s75, [#allocation10], 128, 128, 8
    $region21: #{midi_lm_forward.1} parent=1 // pred_fallthru
      _
    // Predicated region
    $region22: #{midi_lm_forward.1} parent=1 // pred_check
      _
    $region23: #{midi_lm_forward.1} parent=1 // pred_check_branch
      %82 = sbr.rel (0) target = $region25
    $region24: #{midi_lm_forward.1} parent=1 // pred_region
      _
    $region25: #{midi_lm_forward.1} parent=1 // pred_fallthru
      _
    // Predicated region
    $region26: #{midi_lm_forward.1} parent=1 // pred_check
      _
    $region27: #{midi_lm_forward.1} parent=1 // pred_check_branch
      %84 = sbr.rel (0) target = $region29
    $region28: #{midi_lm_forward.1} parent=1 // pred_region
      %86 = dma.done [#allocation4], 1536
    $region29: #{midi_lm_forward.1} parent=1 // pred_fallthru
      _
    // Predicated region
    $region30: #{midi_lm_forward.1} parent=1 // pred_check
      _
    $region31: #{midi_lm_forward.1} parent=1 // pred_check_branch
      %88 = sbr.rel (0) target = $region33
    $region32: #{midi_lm_forward.1} parent=1 // pred_region
      %90 = dma.done [#allocation7], 1024
    $region33: #{midi_lm_forward.1} parent=1 // pred_fallthru
      _
    // Predicated region
    $region34: #{midi_lm_forward.1} parent=1 // pred_check
      _
    $region35: #{midi_lm_forward.1} parent=1 // pred_check_branch
      %92 = sbr.rel (0) target = $region37
    $region36: #{midi_lm_forward.1} parent=1 // pred_region
      %94 = dma.done [#allocation7], 64
    $region37: #{midi_lm_forward.1} parent=1 // pred_fallthru
      _
    // Predicated region
    $region38: #{midi_lm_forward.1} parent=1 // pred_check
      _
    $region39: #{midi_lm_forward.1} parent=1 // pred_check_branch
      %96 = sbr.rel (0) target = $region41
    $region40: #{midi_lm_forward.1} parent=1 // pred_region
      %98 = dma.done [#allocation10], 8192
    $region41: #{midi_lm_forward.1} parent=1 // pred_fallthru
      _
    // Predicated region
    $region42: #{midi_lm_forward.1} parent=1 // pred_check
      _
    $region43: #{midi_lm_forward.1} parent=1 // pred_check_branch
      %100 = sbr.rel (0) target = $region45
    $region44: #{midi_lm_forward.1} parent=1 // pred_region
      %102 = dma.done [#allocation10], 2048
    $region45: #{midi_lm_forward.1} parent=1 // pred_fallthru
      _
    %v103 = vld [vmem:[#allocation3] sm:$0xff]
    %v104 = vld [vmem:[#allocation3 + $0x8] sm:$0xff]
    %v105 = vld [vmem:[#allocation3 + $0x10] sm:$0xff]
    %v106 = vld [vmem:[#allocation3 + $0x18] sm:$0xff]
    %v107 = vld [vmem:[#allocation3 + $0x20] sm:$0xff]
    %v108 = vld [vmem:[#allocation3 + $0x28] sm:$0xff]
    %v109 = vld [vmem:[#allocation3 + $0x30] sm:$0xff]
    %v110 = vld [vmem:[#allocation3 + $0x38] sm:$0xff]
    %v111 = vld [vmem:[#allocation3 + $0x40] sm:$0xff]
    %v112 = vld [vmem:[#allocation3 + $0x48] sm:$0xff]
    %v113 = vld [vmem:[#allocation3 + $0x50] sm:$0xff]
    %v114 = vld [vmem:[#allocation3 + $0x58] sm:$0xff]
    %v115 = vld [vmem:[#allocation6] sm:$0xff]
    %v116 = vld [vmem:[#allocation6 + $0x8] sm:$0xff]
    %v117 = vld [vmem:[#allocation6 + $0x10] sm:$0xff]
    %v118 = vld [vmem:[#allocation6 + $0x18] sm:$0xff]
    %v119 = vld [vmem:[#allocation6 + $0x20] sm:$0xff]
    %v120 = vld [vmem:[#allocation6 + $0x28] sm:$0xff]
    %v121 = vld [vmem:[#allocation6 + $0x30] sm:$0xff]
    %v122 = vld [vmem:[#allocation6 + $0x38] sm:$0xff]
    %v123 = vld [vmem:[#allocation8] sm:$0xf]
    %v125 = vperm.slane %v123, 0
    %v126 = vperm.slane %v123, 1
    %v127 = vperm.slane %v123, 2
    %v128 = vperm.slane %v123, 3
    %vm133 = vcmask 130048
    %v135 = vsel %vm133, %v103, 0
    %v138 = vsel %vm133, %v104, 0
    %v141 = vsel %vm133, %v105, 0
    %v144 = vsel %vm133, %v106, 0
    %v147 = vsel %vm133, %v107, 0
    %v150 = vsel %vm133, %v108, 0
    %v153 = vsel %vm133, %v109, 0
    %v156 = vsel %vm133, %v110, 0
    %v159 = vsel %vm133, %v111, 0
    %v162 = vsel %vm133, %v112, 0
    %v165 = vsel %vm133, %v113, 0
    %v168 = vsel %vm133, %v114, 0
    %170 = vmatpush.msra.mxu0 0.0
    %171 = vmatpush.msra.mxu0 0.0
    %172 = vmatpush.msra.mxu0 0.0
    %173 = vmatpush.msra.mxu0 0.0
    %174 = vmatpush.msra.mxu0 0.0
    %175 = vmatpush.msra.mxu0 0.0
    %176 = vmatpush.msra.mxu0 0.0
    %177 = vmatpush.msra.mxu0 0.0
    %178 = vmatpush.msra.mxu0 0.0
    %179 = vmatpush.msra.mxu0 0.0
    %180 = vmatpush.msra.mxu0 0.0
    %181 = vmatpush.msra.mxu0 0.0
    %182 = vmatpush.msra.mxu0 0.0
    %183 = vmatpush.msra.mxu0 0.0
    %184 = vmatpush.msra.mxu0 %v119
    %185 = vmatpush.msra.mxu0 %v115
    %186 = vmatmul.f32.gmra.mxu0 %v135
    %v187 = vpop.f32.mrf.mxu0
    %v188 = vadd.f32 %v125, %v187
    %189 = vmatmul.f32.gmra.mxu0 %v138
    %v190 = vpop.f32.mrf.mxu0
    %v191 = vadd.f32 %v125, %v190
    %192 = vmatmul.f32.gmra.mxu0 %v141
    %v193 = vpop.f32.mrf.mxu0
    %v194 = vadd.f32 %v125, %v193
    %195 = vmatmul.f32.gmra.mxu0 %v144
    %v196 = vpop.f32.mrf.mxu0
    %v197 = vadd.f32 %v125, %v196
    %198 = vmatmul.f32.gmra.mxu0 %v147
    %v199 = vpop.f32.mrf.mxu0
    %v200 = vadd.f32 %v125, %v199
    %201 = vmatmul.f32.gmra.mxu0 %v150
    %v202 = vpop.f32.mrf.mxu0
    %v203 = vadd.f32 %v125, %v202
    %204 = vmatmul.f32.gmra.mxu0 %v153
    %v205 = vpop.f32.mrf.mxu0
    %v206 = vadd.f32 %v125, %v205
    %207 = vmatmul.f32.gmra.mxu0 %v156
    %v208 = vpop.f32.mrf.mxu0
    %v209 = vadd.f32 %v125, %v208
    %210 = vmatmul.f32.gmra.mxu0 %v159
    %v211 = vpop.f32.mrf.mxu0
    %v212 = vadd.f32 %v125, %v211
    %213 = vmatmul.f32.gmra.mxu0 %v162
    %v214 = vpop.f32.mrf.mxu0
    %v215 = vadd.f32 %v125, %v214
    %216 = vmatmul.f32.gmra.mxu0 %v165
    %v217 = vpop.f32.mrf.mxu0
    %v218 = vadd.f32 %v125, %v217
    %219 = vmatmul.f32.gmra.mxu0 %v168
    %v220 = vpop.f32.mrf.mxu0
    %v221 = vadd.f32 %v125, %v220
    %222 = vdwg.mxu0
    %223 = vmatpush.msra.mxu0 0.0
    %224 = vmatpush.msra.mxu0 0.0
    %225 = vmatpush.msra.mxu0 0.0
    %226 = vmatpush.msra.mxu0 0.0
    %227 = vmatpush.msra.mxu0 0.0
    %228 = vmatpush.msra.mxu0 0.0
    %229 = vmatpush.msra.mxu0 0.0
    %230 = vmatpush.msra.mxu0 0.0
    %231 = vmatpush.msra.mxu0 0.0
    %232 = vmatpush.msra.mxu0 0.0
    %233 = vmatpush.msra.mxu0 0.0
    %234 = vmatpush.msra.mxu0 0.0
    %235 = vmatpush.msra.mxu0 0.0
    %236 = vmatpush.msra.mxu0 0.0
    %237 = vmatpush.msra.mxu0 %v120
    %238 = vmatpush.msra.mxu0 %v116
    %239 = vmatmul.f32.gmra.mxu0 %v135
    %v240 = vpop.f32.mrf.mxu0
    %v241 = vadd.f32 %v126, %v240
    %242 = vmatmul.f32.gmra.mxu0 %v138
    %v243 = vpop.f32.mrf.mxu0
    %v244 = vadd.f32 %v126, %v243
    %245 = vmatmul.f32.gmra.mxu0 %v141
    %v246 = vpop.f32.mrf.mxu0
    %v247 = vadd.f32 %v126, %v246
    %248 = vmatmul.f32.gmra.mxu0 %v144
    %v249 = vpop.f32.mrf.mxu0
    %v250 = vadd.f32 %v126, %v249
    %251 = vmatmul.f32.gmra.mxu0 %v147
    %v252 = vpop.f32.mrf.mxu0
    %v253 = vadd.f32 %v126, %v252
    %254 = vmatmul.f32.gmra.mxu0 %v150
    %v255 = vpop.f32.mrf.mxu0
    %v256 = vadd.f32 %v126, %v255
    %257 = vmatmul.f32.gmra.mxu0 %v153
    %v258 = vpop.f32.mrf.mxu0
    %v259 = vadd.f32 %v126, %v258
    %260 = vmatmul.f32.gmra.mxu0 %v156
    %v261 = vpop.f32.mrf.mxu0
    %v262 = vadd.f32 %v126, %v261
    %263 = vmatmul.f32.gmra.mxu0 %v159
    %v264 = vpop.f32.mrf.mxu0
    %v265 = vadd.f32 %v126, %v264
    %266 = vmatmul.f32.gmra.mxu0 %v162
    %v267 = vpop.f32.mrf.mxu0
    %v268 = vadd.f32 %v126, %v267
    %269 = vmatmul.f32.gmra.mxu0 %v165
    %v270 = vpop.f32.mrf.mxu0
    %v271 = vadd.f32 %v126, %v270
    %272 = vmatmul.f32.gmra.mxu0 %v168
    %v273 = vpop.f32.mrf.mxu0
    %v274 = vadd.f32 %v126, %v273
    %275 = vdwg.mxu0
    %276 = vmatpush.msra.mxu0 0.0
    %277 = vmatpush.msra.mxu0 0.0
    %278 = vmatpush.msra.mxu0 0.0
    %279 = vmatpush.msra.mxu0 0.0
    %280 = vmatpush.msra.mxu0 0.0
    %281 = vmatpush.msra.mxu0 0.0
    %282 = vmatpush.msra.mxu0 0.0
    %283 = vmatpush.msra.mxu0 0.0
    %284 = vmatpush.msra.mxu0 0.0
    %285 = vmatpush.msra.mxu0 0.0
    %286 = vmatpush.msra.mxu0 0.0
    %287 = vmatpush.msra.mxu0 0.0
    %288 = vmatpush.msra.mxu0 0.0
    %289 = vmatpush.msra.mxu0 0.0
    %290 = vmatpush.msra.mxu0 %v121
    %291 = vmatpush.msra.mxu0 %v117
    %292 = vmatmul.f32.gmra.mxu0 %v135
    %v293 = vpop.f32.mrf.mxu0
    %v294 = vadd.f32 %v127, %v293
    %295 = vmatmul.f32.gmra.mxu0 %v138
    %v296 = vpop.f32.mrf.mxu0
    %v297 = vadd.f32 %v127, %v296
    %298 = vmatmul.f32.gmra.mxu0 %v141
    %v299 = vpop.f32.mrf.mxu0
    %v300 = vadd.f32 %v127, %v299
    %301 = vmatmul.f32.gmra.mxu0 %v144
    %v302 = vpop.f32.mrf.mxu0
    %v303 = vadd.f32 %v127, %v302
    %304 = vmatmul.f32.gmra.mxu0 %v147
    %v305 = vpop.f32.mrf.mxu0
    %v306 = vadd.f32 %v127, %v305
    %307 = vmatmul.f32.gmra.mxu0 %v150
    %v308 = vpop.f32.mrf.mxu0
    %v309 = vadd.f32 %v127, %v308
    %310 = vmatmul.f32.gmra.mxu0 %v153
    %v311 = vpop.f32.mrf.mxu0
    %v312 = vadd.f32 %v127, %v311
    %313 = vmatmul.f32.gmra.mxu0 %v156
    %v314 = vpop.f32.mrf.mxu0
    %v315 = vadd.f32 %v127, %v314
    %316 = vmatmul.f32.gmra.mxu0 %v159
    %v317 = vpop.f32.mrf.mxu0
    %v318 = vadd.f32 %v127, %v317
    %319 = vmatmul.f32.gmra.mxu0 %v162
    %v320 = vpop.f32.mrf.mxu0
    %v321 = vadd.f32 %v127, %v320
    %322 = vmatmul.f32.gmra.mxu0 %v165
    %v323 = vpop.f32.mrf.mxu0
    %v324 = vadd.f32 %v127, %v323
    %325 = vmatmul.f32.gmra.mxu0 %v168
    %v326 = vpop.f32.mrf.mxu0
    %v327 = vadd.f32 %v127, %v326
    %328 = vdwg.mxu0
    %329 = vmatpush.msra.mxu0 0.0
    %330 = vmatpush.msra.mxu0 0.0
    %331 = vmatpush.msra.mxu0 0.0
    %332 = vmatpush.msra.mxu0 0.0
    %333 = vmatpush.msra.mxu0 0.0
    %334 = vmatpush.msra.mxu0 0.0
    %335 = vmatpush.msra.mxu0 0.0
    %336 = vmatpush.msra.mxu0 0.0
    %337 = vmatpush.msra.mxu0 0.0
    %338 = vmatpush.msra.mxu0 0.0
    %339 = vmatpush.msra.mxu0 0.0
    %340 = vmatpush.msra.mxu0 0.0
    %341 = vmatpush.msra.mxu0 0.0
    %342 = vmatpush.msra.mxu0 0.0
    %343 = vmatpush.msra.mxu0 %v122
    %344 = vmatpush.msra.mxu0 %v118
    %345 = vmatmul.f32.gmra.mxu0 %v135
    %v346 = vpop.f32.mrf.mxu0
    %v347 = vadd.f32 %v128, %v346
    %348 = vmatmul.f32.gmra.mxu0 %v138
    %v349 = vpop.f32.mrf.mxu0
    %v350 = vadd.f32 %v128, %v349
    %351 = vmatmul.f32.gmra.mxu0 %v141
    %v352 = vpop.f32.mrf.mxu0
    %v353 = vadd.f32 %v128, %v352
    %354 = vmatmul.f32.gmra.mxu0 %v144
    %v355 = vpop.f32.mrf.mxu0
    %v356 = vadd.f32 %v128, %v355
    %357 = vmatmul.f32.gmra.mxu0 %v147
    %v358 = vpop.f32.mrf.mxu0
    %v359 = vadd.f32 %v128, %v358
    %360 = vmatmul.f32.gmra.mxu0 %v150
    %v361 = vpop.f32.mrf.mxu0
    %v362 = vadd.f32 %v128, %v361
    %363 = vmatmul.f32.gmra.mxu0 %v153
    %v364 = vpop.f32.mrf.mxu0
    %v365 = vadd.f32 %v128, %v364
    %366 = vmatmul.f32.gmra.mxu0 %v156
    %v367 = vpop.f32.mrf.mxu0
    %v368 = vadd.f32 %v128, %v367
    %369 = vmatmul.f32.gmra.mxu0 %v159
    %v370 = vpop.f32.mrf.mxu0
    %v371 = vadd.f32 %v128, %v370
    %372 = vmatmul.f32.gmra.mxu0 %v162
    %v373 = vpop.f32.mrf.mxu0
    %v374 = vadd.f32 %v128, %v373
    %375 = vmatmul.f32.gmra.mxu0 %v165
    %v376 = vpop.f32.mrf.mxu0
    %v377 = vadd.f32 %v128, %v376
    %378 = vmatmul.f32.gmra.mxu0 %v168
    %v379 = vpop.f32.mrf.mxu0
    %v380 = vadd.f32 %v128, %v379
    %381 = vdwg.mxu0
    %382 = vst [vmem:[#allocation2] sm:$0xff] %v188
    %383 = vst [vmem:[#allocation2 + $0x8] sm:$0xff] %v241
    %384 = vst [vmem:[#allocation2 + $0x10] sm:$0xff] %v294
    %385 = vst [vmem:[#allocation2 + $0x18] sm:$0xff] %v347
    %386 = vst [vmem:[#allocation2 + $0x20] sm:$0xff] %v191
    %387 = vst [vmem:[#allocation2 + $0x28] sm:$0xff] %v244
    %388 = vst [vmem:[#allocation2 + $0x30] sm:$0xff] %v297
    %389 = vst [vmem:[#allocation2 + $0x38] sm:$0xff] %v350
    %390 = vst [vmem:[#allocation2 + $0x40] sm:$0xff] %v194
    %391 = vst [vmem:[#allocation2 + $0x48] sm:$0xff] %v247
    %392 = vst [vmem:[#allocation2 + $0x50] sm:$0xff] %v300
    %393 = vst [vmem:[#allocation2 + $0x58] sm:$0xff] %v353
    %394 = vst [vmem:[#allocation2 + $0x60] sm:$0xff] %v197
    %395 = vst [vmem:[#allocation2 + $0x68] sm:$0xff] %v250
    %396 = vst [vmem:[#allocation2 + $0x70] sm:$0xff] %v303
    %397 = vst [vmem:[#allocation2 + $0x78] sm:$0xff] %v356
    %398 = vst [vmem:[#allocation2 + $0x80] sm:$0xff] %v200
    %399 = vst [vmem:[#allocation2 + $0x88] sm:$0xff] %v253
    %400 = vst [vmem:[#allocation2 + $0x90] sm:$0xff] %v306
    %401 = vst [vmem:[#allocation2 + $0x98] sm:$0xff] %v359
    %402 = vst [vmem:[#allocation2 + $0xa0] sm:$0xff] %v203
    %403 = vst [vmem:[#allocation2 + $0xa8] sm:$0xff] %v256
    %404 = vst [vmem:[#allocation2 + $0xb0] sm:$0xff] %v309
    %405 = vst [vmem:[#allocation2 + $0xb8] sm:$0xff] %v362
    %406 = vst [vmem:[#allocation2 + $0xc0] sm:$0xff] %v206
    %407 = vst [vmem:[#allocation2 + $0xc8] sm:$0xff] %v259
    %408 = vst [vmem:[#allocation2 + $0xd0] sm:$0xff] %v312
    %409 = vst [vmem:[#allocation2 + $0xd8] sm:$0xff] %v365
    %410 = vst [vmem:[#allocation2 + $0xe0] sm:$0xff] %v209
    %411 = vst [vmem:[#allocation2 + $0xe8] sm:$0xff] %v262
    %412 = vst [vmem:[#allocation2 + $0xf0] sm:$0xff] %v315
    %413 = vst [vmem:[#allocation2 + $0xf8] sm:$0xff] %v368
    %414 = vst [vmem:[#allocation2 + $0x100] sm:$0xff] %v212
    %415 = vst [vmem:[#allocation2 + $0x108] sm:$0xff] %v265
    %416 = vst [vmem:[#allocation2 + $0x110] sm:$0xff] %v318
    %417 = vst [vmem:[#allocation2 + $0x118] sm:$0xff] %v371
    %418 = vst [vmem:[#allocation2 + $0x120] sm:$0xff] %v215
    %419 = vst [vmem:[#allocation2 + $0x128] sm:$0xff] %v268
    %420 = vst [vmem:[#allocation2 + $0x130] sm:$0xff] %v321
    %421 = vst [vmem:[#allocation2 + $0x138] sm:$0xff] %v374
    %422 = vst [vmem:[#allocation2 + $0x140] sm:$0xff] %v218
    %423 = vst [vmem:[#allocation2 + $0x148] sm:$0xff] %v271
    %424 = vst [vmem:[#allocation2 + $0x150] sm:$0xff] %v324
    %425 = vst [vmem:[#allocation2 + $0x158] sm:$0xff] %v377
    %426 = vst [vmem:[#allocation2 + $0x160] sm:$0xff] %v221
    %427 = vst [vmem:[#allocation2 + $0x168] sm:$0xff] %v274
    %428 = vst [vmem:[#allocation2 + $0x170] sm:$0xff] %v327
    %429 = vst [vmem:[#allocation2 + $0x178] sm:$0xff] %v380
    %v430 = vld [vmem:[#allocation9] sm:$0xff]
    %v431 = vld [vmem:[#allocation9 + $0x8] sm:$0xff]
    %v432 = vld [vmem:[#allocation9 + $0x10] sm:$0xff]
    %v433 = vld [vmem:[#allocation9 + $0x18] sm:$0xff]
    %v434 = vld [vmem:[#allocation9 + $0x20] sm:$0xff]
    %v435 = vld [vmem:[#allocation9 + $0x28] sm:$0xff]
    %v436 = vld [vmem:[#allocation9 + $0x30] sm:$0xff]
    %v437 = vld [vmem:[#allocation9 + $0x38] sm:$0xff]
    %v438 = vld [vmem:[#allocation9 + $0x40] sm:$0xff]
    %v439 = vld [vmem:[#allocation9 + $0x48] sm:$0xff]
    %v440 = vld [vmem:[#allocation9 + $0x50] sm:$0xff]
    %v441 = vld [vmem:[#allocation9 + $0x58] sm:$0xff]
    %v442 = vld [vmem:[#allocation9 + $0x60] sm:$0xff]
    %v443 = vld [vmem:[#allocation9 + $0x68] sm:$0xff]
    %v444 = vld [vmem:[#allocation9 + $0x70] sm:$0xff]
    %v445 = vld [vmem:[#allocation9 + $0x78] sm:$0xff]
    %v446 = vld [vmem:[#allocation9 + $0x80] sm:$0xff]
    %v447 = vld [vmem:[#allocation9 + $0x88] sm:$0xff]
    %v448 = vld [vmem:[#allocation9 + $0x90] sm:$0xff]
    %v449 = vld [vmem:[#allocation9 + $0x98] sm:$0xff]
    %v450 = vld [vmem:[#allocation9 + $0xa0] sm:$0xff]
    %v451 = vld [vmem:[#allocation9 + $0xa8] sm:$0xff]
    %v452 = vld [vmem:[#allocation9 + $0xb0] sm:$0xff]
    %v453 = vld [vmem:[#allocation9 + $0xb8] sm:$0xff]
    %v454 = vld [vmem:[#allocation9 + $0xc0] sm:$0xff]
    %v455 = vld [vmem:[#allocation9 + $0xc8] sm:$0xff]
    %v456 = vld [vmem:[#allocation9 + $0xd0] sm:$0xff]
    %v457 = vld [vmem:[#allocation9 + $0xd8] sm:$0xff]
    %v458 = vld [vmem:[#allocation9 + $0xe0] sm:$0xff]
    %v459 = vld [vmem:[#allocation9 + $0xe8] sm:$0xff]
    %v460 = vld [vmem:[#allocation9 + $0xf0] sm:$0xff]
    %v461 = vld [vmem:[#allocation9 + $0xf8] sm:$0xff]
    %v462 = vld [vmem:[#allocation9 + $0x100] sm:$0xff]
    %v463 = vld [vmem:[#allocation9 + $0x108] sm:$0xff]
    %v464 = vld [vmem:[#allocation9 + $0x110] sm:$0xff]
    %v465 = vld [vmem:[#allocation9 + $0x118] sm:$0xff]
    %v466 = vld [vmem:[#allocation9 + $0x120] sm:$0xff]
    %v467 = vld [vmem:[#allocation9 + $0x128] sm:$0xff]
    %v468 = vld [vmem:[#allocation9 + $0x130] sm:$0xff]
    %v469 = vld [vmem:[#allocation9 + $0x138] sm:$0xff]
    %v470 = vld [vmem:[#allocation9 + $0x140] sm:$0xff]
    %v471 = vld [vmem:[#allocation9 + $0x148] sm:$0xff]
    %v472 = vld [vmem:[#allocation9 + $0x150] sm:$0xff]
    %v473 = vld [vmem:[#allocation9 + $0x158] sm:$0xff]
    %v474 = vld [vmem:[#allocation9 + $0x160] sm:$0xff]
    %v475 = vld [vmem:[#allocation9 + $0x168] sm:$0xff]
    %v476 = vld [vmem:[#allocation9 + $0x170] sm:$0xff]
    %v477 = vld [vmem:[#allocation9 + $0x178] sm:$0xff]
    %v478 = vld [vmem:[#allocation9 + $0x180] sm:$0xff]
    %v479 = vld [vmem:[#allocation9 + $0x188] sm:$0xff]
    %v480 = vld [vmem:[#allocation9 + $0x190] sm:$0xff]
    %v481 = vld [vmem:[#allocation9 + $0x198] sm:$0xff]
    %v482 = vld [vmem:[#allocation9 + $0x1a0] sm:$0xff]
    %v483 = vld [vmem:[#allocation9 + $0x1a8] sm:$0xff]
    %v484 = vld [vmem:[#allocation9 + $0x1b0] sm:$0xff]
    %v485 = vld [vmem:[#allocation9 + $0x1b8] sm:$0xff]
    %v486 = vld [vmem:[#allocation9 + $0x1c0] sm:$0xff]
    %v487 = vld [vmem:[#allocation9 + $0x1c8] sm:$0xff]
    %v488 = vld [vmem:[#allocation9 + $0x1d0] sm:$0xff]
    %v489 = vld [vmem:[#allocation9 + $0x1d8] sm:$0xff]
    %v490 = vld [vmem:[#allocation9 + $0x1e0] sm:$0xff]
    %v491 = vld [vmem:[#allocation9 + $0x1e8] sm:$0xff]
    %v492 = vld [vmem:[#allocation9 + $0x1f0] sm:$0xff]
    %v493 = vld [vmem:[#allocation9 + $0x1f8] sm:$0xff]
    %v494 = vld [vmem:[#allocation2] sm:$0xff]
    %v495 = vld [vmem:[#allocation2 + $0x8] sm:$0xff]
    %v496 = vld [vmem:[#allocation2 + $0x10] sm:$0xff]
    %v497 = vld [vmem:[#allocation2 + $0x18] sm:$0xff]
    %498 = vmatpush.msra.mxu0 %v490
    %499 = vmatpush.msra.mxu0 %v486
    %500 = vmatpush.msra.mxu0 %v482
    %501 = vmatpush.msra.mxu0 %v478
    %502 = vmatpush.msra.mxu0 %v474
    %503 = vmatpush.msra.mxu0 %v470
    %504 = vmatpush.msra.mxu0 %v466
    %505 = vmatpush.msra.mxu0 %v462
    %506 = vmatpush.msra.mxu0 %v458
    %507 = vmatpush.msra.mxu0 %v454
    %508 = vmatpush.msra.mxu0 %v450
    %509 = vmatpush.msra.mxu0 %v446
    %510 = vmatpush.msra.mxu0 %v442
    %511 = vmatpush.msra.mxu0 %v438
    %512 = vmatpush.msra.mxu0 %v434
    %513 = vmatpush.msra.mxu0 %v430
    %514 = vmatmul.f32.gmra.mxu0 0.0
    %v515 = vpop.f32.mrf.mxu0
    %v516 = vadd.f32 %v494, %v515
    %517 = vdwg.mxu0
    %518 = vmatpush.msra.mxu0 %v491
    %519 = vmatpush.msra.mxu0 %v487
    %520 = vmatpush.msra.mxu0 %v483
    %521 = vmatpush.msra.mxu0 %v479
    %522 = vmatpush.msra.mxu0 %v475
    %523 = vmatpush.msra.mxu0 %v471
    %524 = vmatpush.msra.mxu0 %v467
    %525 = vmatpush.msra.mxu0 %v463
    %526 = vmatpush.msra.mxu0 %v459
    %527 = vmatpush.msra.mxu0 %v455
    %528 = vmatpush.msra.mxu0 %v451
    %529 = vmatpush.msra.mxu0 %v447
    %530 = vmatpush.msra.mxu0 %v443
    %531 = vmatpush.msra.mxu0 %v439
    %532 = vmatpush.msra.mxu0 %v435
    %533 = vmatpush.msra.mxu0 %v431
    %534 = vmatmul.f32.gmra.mxu0 0.0
    %v535 = vpop.f32.mrf.mxu0
    %v536 = vadd.f32 %v495, %v535
    %537 = vdwg.mxu0
    %538 = vmatpush.msra.mxu0 %v492
    %539 = vmatpush.msra.mxu0 %v488
    %540 = vmatpush.msra.mxu0 %v484
    %541 = vmatpush.msra.mxu0 %v480
    %542 = vmatpush.msra.mxu0 %v476
    %543 = vmatpush.msra.mxu0 %v472
    %544 = vmatpush.msra.mxu0 %v468
    %545 = vmatpush.msra.mxu0 %v464
    %546 = vmatpush.msra.mxu0 %v460
    %547 = vmatpush.msra.mxu0 %v456
    %548 = vmatpush.msra.mxu0 %v452
    %549 = vmatpush.msra.mxu0 %v448
    %550 = vmatpush.msra.mxu0 %v444
    %551 = vmatpush.msra.mxu0 %v440
    %552 = vmatpush.msra.mxu0 %v436
    %553 = vmatpush.msra.mxu0 %v432
    %554 = vmatmul.f32.gmra.mxu0 0.0
    %v555 = vpop.f32.mrf.mxu0
    %v556 = vadd.f32 %v496, %v555
    %557 = vdwg.mxu0
    %558 = vmatpush.msra.mxu0 %v493
    %559 = vmatpush.msra.mxu0 %v489
    %560 = vmatpush.msra.mxu0 %v485
    %561 = vmatpush.msra.mxu0 %v481
    %562 = vmatpush.msra.mxu0 %v477
    %563 = vmatpush.msra.mxu0 %v473
    %564 = vmatpush.msra.mxu0 %v469
    %565 = vmatpush.msra.mxu0 %v465
    %566 = vmatpush.msra.mxu0 %v461
    %567 = vmatpush.msra.mxu0 %v457
    %568 = vmatpush.msra.mxu0 %v453
    %569 = vmatpush.msra.mxu0 %v449
    %570 = vmatpush.msra.mxu0 %v445
    %571 = vmatpush.msra.mxu0 %v441
    %572 = vmatpush.msra.mxu0 %v437
    %573 = vmatpush.msra.mxu0 %v433
    %574 = vmatmul.f32.gmra.mxu0 0.0
    %v575 = vpop.f32.mrf.mxu0
    %v576 = vadd.f32 %v497, %v575
    %577 = vdwg.mxu0
    %v578 = vmul.f32 %v516, 0.5
    %v579 = vtanh.pop %v578
    %v580 = vmul.f32 %v579, 0.5
    %v581 = vadd.f32 %v580, 0.5
    %v582 = vmul.f32 %v536, 0.5
    %v583 = vtanh.pop %v582
    %v584 = vmul.f32 %v583, 0.5
    %v585 = vadd.f32 %v584, 0.5
    %v586 = vtanh.pop %v556
    %v587 = vmul.f32 %v576, 0.5
    %v588 = vtanh.pop %v587
    %v589 = vmul.f32 %v588, 0.5
    %v590 = vadd.f32 %v589, 0.5
    %v591 = vmul.f32 %v585, 0.0
    %v592 = vmul.f32 %v581, %v586
    %v593 = vadd.f32 %v591, %v592
    %v594 = vtanh.pop %v593
    %v595 = vmul.f32 %v590, %v594
    %596 = vst [vmem:[#allocation13] sm:$0xff] %v595
    %v597 = vld [vmem:[#allocation2 + $0x20] sm:$0xff]
    %v598 = vld [vmem:[#allocation2 + $0x28] sm:$0xff]
    %v599 = vld [vmem:[#allocation2 + $0x30] sm:$0xff]
    %v600 = vld [vmem:[#allocation2 + $0x38] sm:$0xff]
    %601 = vmatpush.msra.mxu0 %v490
    %602 = vmatpush.msra.mxu0 %v486
    %603 = vmatpush.msra.mxu0 %v482
    %604 = vmatpush.msra.mxu0 %v478
    %605 = vmatpush.msra.mxu0 %v474
    %606 = vmatpush.msra.mxu0 %v470
    %607 = vmatpush.msra.mxu0 %v466
    %608 = vmatpush.msra.mxu0 %v462
    %609 = vmatpush.msra.mxu0 %v458
    %610 = vmatpush.msra.mxu0 %v454
    %611 = vmatpush.msra.mxu0 %v450
    %612 = vmatpush.msra.mxu0 %v446
    %613 = vmatpush.msra.mxu0 %v442
    %614 = vmatpush.msra.mxu0 %v438
    %615 = vmatpush.msra.mxu0 %v434
    %616 = vmatpush.msra.mxu0 %v430
    %617 = vmatmul.f32.gmra.mxu0 %v595
    %v618 = vpop.f32.mrf.mxu0
    %v619 = vadd.f32 %v597, %v618
    %620 = vdwg.mxu0
    %621 = vmatpush.msra.mxu0 %v491
    %622 = vmatpush.msra.mxu0 %v487
    %623 = vmatpush.msra.mxu0 %v483
    %624 = vmatpush.msra.mxu0 %v479
    %625 = vmatpush.msra.mxu0 %v475
    %626 = vmatpush.msra.mxu0 %v471
    %627 = vmatpush.msra.mxu0 %v467
    %628 = vmatpush.msra.mxu0 %v463
    %629 = vmatpush.msra.mxu0 %v459
    %630 = vmatpush.msra.mxu0 %v455
    %631 = vmatpush.msra.mxu0 %v451
    %632 = vmatpush.msra.mxu0 %v447
    %633 = vmatpush.msra.mxu0 %v443
    %634 = vmatpush.msra.mxu0 %v439
    %635 = vmatpush.msra.mxu0 %v435
    %636 = vmatpush.msra.mxu0 %v431
    %637 = vmatmul.f32.gmra.mxu0 %v595
    %v638 = vpop.f32.mrf.mxu0
    %v639 = vadd.f32 %v598, %v638
    %640 = vdwg.mxu0
    %641 = vmatpush.msra.mxu0 %v492
    %642 = vmatpush.msra.mxu0 %v488
    %643 = vmatpush.msra.mxu0 %v484
    %644 = vmatpush.msra.mxu0 %v480
    %645 = vmatpush.msra.mxu0 %v476
    %646 = vmatpush.msra.mxu0 %v472
    %647 = vmatpush.msra.mxu0 %v468
    %648 = vmatpush.msra.mxu0 %v464
    %649 = vmatpush.msra.mxu0 %v460
    %650 = vmatpush.msra.mxu0 %v456
    %651 = vmatpush.msra.mxu0 %v452
    %652 = vmatpush.msra.mxu0 %v448
    %653 = vmatpush.msra.mxu0 %v444
    %654 = vmatpush.msra.mxu0 %v440
    %655 = vmatpush.msra.mxu0 %v436
    %656 = vmatpush.msra.mxu0 %v432
    %657 = vmatmul.f32.gmra.mxu0 %v595
    %v658 = vpop.f32.mrf.mxu0
    %v659 = vadd.f32 %v599, %v658
    %660 = vdwg.mxu0
    %661 = vmatpush.msra.mxu0 %v493
    %662 = vmatpush.msra.mxu0 %v489
    %663 = vmatpush.msra.mxu0 %v485
    %664 = vmatpush.msra.mxu0 %v481
    %665 = vmatpush.msra.mxu0 %v477
    %666 = vmatpush.msra.mxu0 %v473
    %667 = vmatpush.msra.mxu0 %v469
    %668 = vmatpush.msra.mxu0 %v465
    %669 = vmatpush.msra.mxu0 %v461
    %670 = vmatpush.msra.mxu0 %v457
    %671 = vmatpush.msra.mxu0 %v453
    %672 = vmatpush.msra.mxu0 %v449
    %673 = vmatpush.msra.mxu0 %v445
    %674 = vmatpush.msra.mxu0 %v441
    %675 = vmatpush.msra.mxu0 %v437
    %676 = vmatpush.msra.mxu0 %v433
    %677 = vmatmul.f32.gmra.mxu0 %v595
    %v678 = vpop.f32.mrf.mxu0
    %v679 = vadd.f32 %v600, %v678
    %680 = vdwg.mxu0
    %v681 = vmul.f32 %v619, 0.5
    %v682 = vtanh.pop %v681
    %v683 = vmul.f32 %v682, 0.5
    %v684 = vadd.f32 %v683, 0.5
    %v685 = vmul.f32 %v639, 0.5
    %v686 = vtanh.pop %v685
    %v687 = vmul.f32 %v686, 0.5
    %v688 = vadd.f32 %v687, 0.5
    %v689 = vtanh.pop %v659
    %v690 = vmul.f32 %v679, 0.5
    %v691 = vtanh.pop %v690
    %v692 = vmul.f32 %v691, 0.5
    %v693 = vadd.f32 %v692, 0.5
    %v694 = vmul.f32 %v688, %v593
    %v695 = vmul.f32 %v684, %v689
    %v696 = vadd.f32 %v694, %v695
    %v697 = vtanh.pop %v696
    %v698 = vmul.f32 %v693, %v697
    %699 = vst [vmem:[#allocation13 + $0x8] sm:$0xff] %v698
    %v700 = vld [vmem:[#allocation2 + $0x40] sm:$0xff]
    %v701 = vld [vmem:[#allocation2 + $0x48] sm:$0xff]
    %v702 = vld [vmem:[#allocation2 + $0x50] sm:$0xff]
    %v703 = vld [vmem:[#allocation2 + $0x58] sm:$0xff]
    %704 = vmatpush.msra.mxu0 %v490
    %705 = vmatpush.msra.mxu0 %v486
    %706 = vmatpush.msra.mxu0 %v482
    %707 = vmatpush.msra.mxu0 %v478
    %708 = vmatpush.msra.mxu0 %v474
    %709 = vmatpush.msra.mxu0 %v470
    %710 = vmatpush.msra.mxu0 %v466
    %711 = vmatpush.msra.mxu0 %v462
    %712 = vmatpush.msra.mxu0 %v458
    %713 = vmatpush.msra.mxu0 %v454
    %714 = vmatpush.msra.mxu0 %v450
    %715 = vmatpush.msra.mxu0 %v446
    %716 = vmatpush.msra.mxu0 %v442
    %717 = vmatpush.msra.mxu0 %v438
    %718 = vmatpush.msra.mxu0 %v434
    %719 = vmatpush.msra.mxu0 %v430
    %720 = vmatmul.f32.gmra.mxu0 %v698
    %v721 = vpop.f32.mrf.mxu0
    %v722 = vadd.f32 %v700, %v721
    %723 = vdwg.mxu0
    %724 = vmatpush.msra.mxu0 %v491
    %725 = vmatpush.msra.mxu0 %v487
    %726 = vmatpush.msra.mxu0 %v483
    %727 = vmatpush.msra.mxu0 %v479
    %728 = vmatpush.msra.mxu0 %v475
    %729 = vmatpush.msra.mxu0 %v471
    %730 = vmatpush.msra.mxu0 %v467
    %731 = vmatpush.msra.mxu0 %v463
    %732 = vmatpush.msra.mxu0 %v459
    %733 = vmatpush.msra.mxu0 %v455
    %734 = vmatpush.msra.mxu0 %v451
    %735 = vmatpush.msra.mxu0 %v447
    %736 = vmatpush.msra.mxu0 %v443
    %737 = vmatpush.msra.mxu0 %v439
    %738 = vmatpush.msra.mxu0 %v435
    %739 = vmatpush.msra.mxu0 %v431
    %740 = vmatmul.f32.gmra.mxu0 %v698
    %v741 = vpop.f32.mrf.mxu0
    %v742 = vadd.f32 %v701, %v741
    %743 = vdwg.mxu0
    %744 = vmatpush.msra.mxu0 %v492
    %745 = vmatpush.msra.mxu0 %v488
    %746 = vmatpush.msra.mxu0 %v484
    %747 = vmatpush.msra.mxu0 %v480
    %748 = vmatpush.msra.mxu0 %v476
    %749 = vmatpush.msra.mxu0 %v472
    %750 = vmatpush.msra.mxu0 %v468
    %751 = vmatpush.msra.mxu0 %v464
    %752 = vmatpush.msra.mxu0 %v460
    %753 = vmatpush.msra.mxu0 %v456
    %754 = vmatpush.msra.mxu0 %v452
    %755 = vmatpush.msra.mxu0 %v448
    %756 = vmatpush.msra.mxu0 %v444
    %757 = vmatpush.msra.mxu0 %v440
    %758 = vmatpush.msra.mxu0 %v436
    %759 = vmatpush.msra.mxu0 %v432
    %760 = vmatmul.f32.gmra.mxu0 %v698
    %v761 = vpop.f32.mrf.mxu0
    %v762 = vadd.f32 %v702, %v761
    %763 = vdwg.mxu0
    %764 = vmatpush.msra.mxu0 %v493
    %765 = vmatpush.msra.mxu0 %v489
    %766 = vmatpush.msra.mxu0 %v485
    %767 = vmatpush.msra.mxu0 %v481
    %768 = vmatpush.msra.mxu0 %v477
    %769 = vmatpush.msra.mxu0 %v473
    %770 = vmatpush.msra.mxu0 %v469
    %771 = vmatpush.msra.mxu0 %v465
    %772 = vmatpush.msra.mxu0 %v461
    %773 = vmatpush.msra.mxu0 %v457
    %774 = vmatpush.msra.mxu0 %v453
    %775 = vmatpush.msra.mxu0 %v449
    %776 = vmatpush.msra.mxu0 %v445
    %777 = vmatpush.msra.mxu0 %v441
    %778 = vmatpush.msra.mxu0 %v437
    %779 = vmatpush.msra.mxu0 %v433
    %780 = vmatmul.f32.gmra.mxu0 %v698
    %v781 = vpop.f32.mrf.mxu0
    %v782 = vadd.f32 %v703, %v781
    %783 = vdwg.mxu0
    %v784 = vmul.f32 %v722, 0.5
    %v785 = vtanh.pop %v784
    %v786 = vmul.f32 %v785, 0.5
    %v787 = vadd.f32 %v786, 0.5
    %v788 = vmul.f32 %v742, 0.5
    %v789 = vtanh.pop %v788
    %v790 = vmul.f32 %v789, 0.5
    %v791 = vadd.f32 %v790, 0.5
    %v792 = vtanh.pop %v762
    %v793 = vmul.f32 %v782, 0.5
    %v794 = vtanh.pop %v793
    %v795 = vmul.f32 %v794, 0.5
    %v796 = vadd.f32 %v795, 0.5
    %v797 = vmul.f32 %v791, %v696
    %v798 = vmul.f32 %v787, %v792
    %v799 = vadd.f32 %v797, %v798
    %v800 = vtanh.pop %v799
    %v801 = vmul.f32 %v796, %v800
    %802 = vst [vmem:[#allocation13 + $0x10] sm:$0xff] %v801
    %v803 = vld [vmem:[#allocation2 + $0x60] sm:$0xff]
    %v804 = vld [vmem:[#allocation2 + $0x68] sm:$0xff]
    %v805 = vld [vmem:[#allocation2 + $0x70] sm:$0xff]
    %v806 = vld [vmem:[#allocation2 + $0x78] sm:$0xff]
    %807 = vmatpush.msra.mxu0 %v490
    %808 = vmatpush.msra.mxu0 %v486
    %809 = vmatpush.msra.mxu0 %v482
    %810 = vmatpush.msra.mxu0 %v478
    %811 = vmatpush.msra.mxu0 %v474
    %812 = vmatpush.msra.mxu0 %v470
    %813 = vmatpush.msra.mxu0 %v466
    %814 = vmatpush.msra.mxu0 %v462
    %815 = vmatpush.msra.mxu0 %v458
    %816 = vmatpush.msra.mxu0 %v454
    %817 = vmatpush.msra.mxu0 %v450
    %818 = vmatpush.msra.mxu0 %v446
    %819 = vmatpush.msra.mxu0 %v442
    %820 = vmatpush.msra.mxu0 %v438
    %821 = vmatpush.msra.mxu0 %v434
    %822 = vmatpush.msra.mxu0 %v430
    %823 = vmatmul.f32.gmra.mxu0 %v801
    %v824 = vpop.f32.mrf.mxu0
    %v825 = vadd.f32 %v803, %v824
    %826 = vdwg.mxu0
    %827 = vmatpush.msra.mxu0 %v491
    %828 = vmatpush.msra.mxu0 %v487
    %829 = vmatpush.msra.mxu0 %v483
    %830 = vmatpush.msra.mxu0 %v479
    %831 = vmatpush.msra.mxu0 %v475
    %832 = vmatpush.msra.mxu0 %v471
    %833 = vmatpush.msra.mxu0 %v467
    %834 = vmatpush.msra.mxu0 %v463
    %835 = vmatpush.msra.mxu0 %v459
    %836 = vmatpush.msra.mxu0 %v455
    %837 = vmatpush.msra.mxu0 %v451
    %838 = vmatpush.msra.mxu0 %v447
    %839 = vmatpush.msra.mxu0 %v443
    %840 = vmatpush.msra.mxu0 %v439
    %841 = vmatpush.msra.mxu0 %v435
    %842 = vmatpush.msra.mxu0 %v431
    %843 = vmatmul.f32.gmra.mxu0 %v801
    %v844 = vpop.f32.mrf.mxu0
    %v845 = vadd.f32 %v804, %v844
    %846 = vdwg.mxu0
    %847 = vmatpush.msra.mxu0 %v492
    %848 = vmatpush.msra.mxu0 %v488
    %849 = vmatpush.msra.mxu0 %v484
    %850 = vmatpush.msra.mxu0 %v480
    %851 = vmatpush.msra.mxu0 %v476
    %852 = vmatpush.msra.mxu0 %v472
    %853 = vmatpush.msra.mxu0 %v468
    %854 = vmatpush.msra.mxu0 %v464
    %855 = vmatpush.msra.mxu0 %v460
    %856 = vmatpush.msra.mxu0 %v456
    %857 = vmatpush.msra.mxu0 %v452
    %858 = vmatpush.msra.mxu0 %v448
    %859 = vmatpush.msra.mxu0 %v444
    %860 = vmatpush.msra.mxu0 %v440
    %861 = vmatpush.msra.mxu0 %v436
    %862 = vmatpush.msra.mxu0 %v432
    %863 = vmatmul.f32.gmra.mxu0 %v801
    %v864 = vpop.f32.mrf.mxu0
    %v865 = vadd.f32 %v805, %v864
    %866 = vdwg.mxu0
    %867 = vmatpush.msra.mxu0 %v493
    %868 = vmatpush.msra.mxu0 %v489
    %869 = vmatpush.msra.mxu0 %v485
    %870 = vmatpush.msra.mxu0 %v481
    %871 = vmatpush.msra.mxu0 %v477
    %872 = vmatpush.msra.mxu0 %v473
    %873 = vmatpush.msra.mxu0 %v469
    %874 = vmatpush.msra.mxu0 %v465
    %875 = vmatpush.msra.mxu0 %v461
    %876 = vmatpush.msra.mxu0 %v457
    %877 = vmatpush.msra.mxu0 %v453
    %878 = vmatpush.msra.mxu0 %v449
    %879 = vmatpush.msra.mxu0 %v445
    %880 = vmatpush.msra.mxu0 %v441
    %881 = vmatpush.msra.mxu0 %v437
    %882 = vmatpush.msra.mxu0 %v433
    %883 = vmatmul.f32.gmra.mxu0 %v801
    %v884 = vpop.f32.mrf.mxu0
    %v885 = vadd.f32 %v806, %v884
    %886 = vdwg.mxu0
    %v887 = vmul.f32 %v825, 0.5
    %v888 = vtanh.pop %v887
    %v889 = vmul.f32 %v888, 0.5
    %v890 = vadd.f32 %v889, 0.5
    %v891 = vmul.f32 %v845, 0.5
    %v892 = vtanh.pop %v891
    %v893 = vmul.f32 %v892, 0.5
    %v894 = vadd.f32 %v893, 0.5
    %v895 = vtanh.pop %v865
    %v896 = vmul.f32 %v885, 0.5
    %v897 = vtanh.pop %v896
    %v898 = vmul.f32 %v897, 0.5
    %v899 = vadd.f32 %v898, 0.5
    %v900 = vmul.f32 %v894, %v799
    %v901 = vmul.f32 %v890, %v895
    %v902 = vadd.f32 %v900, %v901
    %v903 = vtanh.pop %v902
    %v904 = vmul.f32 %v899, %v903
    %905 = vst [vmem:[#allocation13 + $0x18] sm:$0xff] %v904
    %v906 = vld [vmem:[#allocation2 + $0x80] sm:$0xff]
    %v907 = vld [vmem:[#allocation2 + $0x88] sm:$0xff]
    %v908 = vld [vmem:[#allocation2 + $0x90] sm:$0xff]
    %v909 = vld [vmem:[#allocation2 + $0x98] sm:$0xff]
    %910 = vmatpush.msra.mxu0 %v490
    %911 = vmatpush.msra.mxu0 %v486
    %912 = vmatpush.msra.mxu0 %v482
    %913 = vmatpush.msra.mxu0 %v478
    %914 = vmatpush.msra.mxu0 %v474
    %915 = vmatpush.msra.mxu0 %v470
    %916 = vmatpush.msra.mxu0 %v466
    %917 = vmatpush.msra.mxu0 %v462
    %918 = vmatpush.msra.mxu0 %v458
    %919 = vmatpush.msra.mxu0 %v454
    %920 = vmatpush.msra.mxu0 %v450
    %921 = vmatpush.msra.mxu0 %v446
    %922 = vmatpush.msra.mxu0 %v442
    %923 = vmatpush.msra.mxu0 %v438
    %924 = vmatpush.msra.mxu0 %v434
    %925 = vmatpush.msra.mxu0 %v430
    %926 = vmatmul.f32.gmra.mxu0 %v904
    %v927 = vpop.f32.mrf.mxu0
    %v928 = vadd.f32 %v906, %v927
    %929 = vdwg.mxu0
    %930 = vmatpush.msra.mxu0 %v491
    %931 = vmatpush.msra.mxu0 %v487
    %932 = vmatpush.msra.mxu0 %v483
    %933 = vmatpush.msra.mxu0 %v479
    %934 = vmatpush.msra.mxu0 %v475
    %935 = vmatpush.msra.mxu0 %v471
    %936 = vmatpush.msra.mxu0 %v467
    %937 = vmatpush.msra.mxu0 %v463
    %938 = vmatpush.msra.mxu0 %v459
    %939 = vmatpush.msra.mxu0 %v455
    %940 = vmatpush.msra.mxu0 %v451
    %941 = vmatpush.msra.mxu0 %v447
    %942 = vmatpush.msra.mxu0 %v443
    %943 = vmatpush.msra.mxu0 %v439
    %944 = vmatpush.msra.mxu0 %v435
    %945 = vmatpush.msra.mxu0 %v431
    %946 = vmatmul.f32.gmra.mxu0 %v904
    %v947 = vpop.f32.mrf.mxu0
    %v948 = vadd.f32 %v907, %v947
    %949 = vdwg.mxu0
    %950 = vmatpush.msra.mxu0 %v492
    %951 = vmatpush.msra.mxu0 %v488
    %952 = vmatpush.msra.mxu0 %v484
    %953 = vmatpush.msra.mxu0 %v480
    %954 = vmatpush.msra.mxu0 %v476
    %955 = vmatpush.msra.mxu0 %v472
    %956 = vmatpush.msra.mxu0 %v468
    %957 = vmatpush.msra.mxu0 %v464
    %958 = vmatpush.msra.mxu0 %v460
    %959 = vmatpush.msra.mxu0 %v456
    %960 = vmatpush.msra.mxu0 %v452
    %961 = vmatpush.msra.mxu0 %v448
    %962 = vmatpush.msra.mxu0 %v444
    %963 = vmatpush.msra.mxu0 %v440
    %964 = vmatpush.msra.mxu0 %v436
    %965 = vmatpush.msra.mxu0 %v432
    %966 = vmatmul.f32.gmra.mxu0 %v904
    %v967 = vpop.f32.mrf.mxu0
    %v968 = vadd.f32 %v908, %v967
    %969 = vdwg.mxu0
    %970 = vmatpush.msra.mxu0 %v493
    %971 = vmatpush.msra.mxu0 %v489
    %972 = vmatpush.msra.mxu0 %v485
    %973 = vmatpush.msra.mxu0 %v481
    %974 = vmatpush.msra.mxu0 %v477
    %975 = vmatpush.msra.mxu0 %v473
    %976 = vmatpush.msra.mxu0 %v469
    %977 = vmatpush.msra.mxu0 %v465
    %978 = vmatpush.msra.mxu0 %v461
    %979 = vmatpush.msra.mxu0 %v457
    %980 = vmatpush.msra.mxu0 %v453
    %981 = vmatpush.msra.mxu0 %v449
    %982 = vmatpush.msra.mxu0 %v445
    %983 = vmatpush.msra.mxu0 %v441
    %984 = vmatpush.msra.mxu0 %v437
    %985 = vmatpush.msra.mxu0 %v433
    %986 = vmatmul.f32.gmra.mxu0 %v904
    %v987 = vpop.f32.mrf.mxu0
    %v988 = vadd.f32 %v909, %v987
    %989 = vdwg.mxu0
    %v990 = vmul.f32 %v928, 0.5
    %v991 = vtanh.pop %v990
    %v992 = vmul.f32 %v991, 0.5
    %v993 = vadd.f32 %v992, 0.5
    %v994 = vmul.f32 %v948, 0.5
    %v995 = vtanh.pop %v994
    %v996 = vmul.f32 %v995, 0.5
    %v997 = vadd.f32 %v996, 0.5
    %v998 = vtanh.pop %v968
    %v999 = vmul.f32 %v988, 0.5
    %v1000 = vtanh.pop %v999
    %v1001 = vmul.f32 %v1000, 0.5
    %v1002 = vadd.f32 %v1001, 0.5
    %v1003 = vmul.f32 %v997, %v902
    %v1004 = vmul.f32 %v993, %v998
    %v1005 = vadd.f32 %v1003, %v1004
    %v1006 = vtanh.pop %v1005
    %v1007 = vmul.f32 %v1002, %v1006
    %1008 = vst [vmem:[#allocation13 + $0x20] sm:$0xff] %v1007
    %v1009 = vld [vmem:[#allocation2 + $0xa0] sm:$0xff]
    %v1010 = vld [vmem:[#allocation2 + $0xa8] sm:$0xff]
    %v1011 = vld [vmem:[#allocation2 + $0xb0] sm:$0xff]
    %v1012 = vld [vmem:[#allocation2 + $0xb8] sm:$0xff]
    %1013 = vmatpush.msra.mxu0 %v490
    %1014 = vmatpush.msra.mxu0 %v486
    %1015 = vmatpush.msra.mxu0 %v482
    %1016 = vmatpush.msra.mxu0 %v478
    %1017 = vmatpush.msra.mxu0 %v474
    %1018 = vmatpush.msra.mxu0 %v470
    %1019 = vmatpush.msra.mxu0 %v466
    %1020 = vmatpush.msra.mxu0 %v462
    %1021 = vmatpush.msra.mxu0 %v458
    %1022 = vmatpush.msra.mxu0 %v454
    %1023 = vmatpush.msra.mxu0 %v450
    %1024 = vmatpush.msra.mxu0 %v446
    %1025 = vmatpush.msra.mxu0 %v442
    %1026 = vmatpush.msra.mxu0 %v438
    %1027 = vmatpush.msra.mxu0 %v434
    %1028 = vmatpush.msra.mxu0 %v430
    %1029 = vmatmul.f32.gmra.mxu0 %v1007
    %v1030 = vpop.f32.mrf.mxu0
    %v1031 = vadd.f32 %v1009, %v1030
    %1032 = vdwg.mxu0
    %1033 = vmatpush.msra.mxu0 %v491
    %1034 = vmatpush.msra.mxu0 %v487
    %1035 = vmatpush.msra.mxu0 %v483
    %1036 = vmatpush.msra.mxu0 %v479
    %1037 = vmatpush.msra.mxu0 %v475
    %1038 = vmatpush.msra.mxu0 %v471
    %1039 = vmatpush.msra.mxu0 %v467
    %1040 = vmatpush.msra.mxu0 %v463
    %1041 = vmatpush.msra.mxu0 %v459
    %1042 = vmatpush.msra.mxu0 %v455
    %1043 = vmatpush.msra.mxu0 %v451
    %1044 = vmatpush.msra.mxu0 %v447
    %1045 = vmatpush.msra.mxu0 %v443
    %1046 = vmatpush.msra.mxu0 %v439
    %1047 = vmatpush.msra.mxu0 %v435
    %1048 = vmatpush.msra.mxu0 %v431
    %1049 = vmatmul.f32.gmra.mxu0 %v1007
    %v1050 = vpop.f32.mrf.mxu0
    %v1051 = vadd.f32 %v1010, %v1050
    %1052 = vdwg.mxu0
    %1053 = vmatpush.msra.mxu0 %v492
    %1054 = vmatpush.msra.mxu0 %v488
    %1055 = vmatpush.msra.mxu0 %v484
    %1056 = vmatpush.msra.mxu0 %v480
    %1057 = vmatpush.msra.mxu0 %v476
    %1058 = vmatpush.msra.mxu0 %v472
    %1059 = vmatpush.msra.mxu0 %v468
    %1060 = vmatpush.msra.mxu0 %v464
    %1061 = vmatpush.msra.mxu0 %v460
    %1062 = vmatpush.msra.mxu0 %v456
    %1063 = vmatpush.msra.mxu0 %v452
    %1064 = vmatpush.msra.mxu0 %v448
    %1065 = vmatpush.msra.mxu0 %v444
    %1066 = vmatpush.msra.mxu0 %v440
    %1067 = vmatpush.msra.mxu0 %v436
    %1068 = vmatpush.msra.mxu0 %v432
    %1069 = vmatmul.f32.gmra.mxu0 %v1007
    %v1070 = vpop.f32.mrf.mxu0
    %v1071 = vadd.f32 %v1011, %v1070
    %1072 = vdwg.mxu0
    %1073 = vmatpush.msra.mxu0 %v493
    %1074 = vmatpush.msra.mxu0 %v489
    %1075 = vmatpush.msra.mxu0 %v485
    %1076 = vmatpush.msra.mxu0 %v481
    %1077 = vmatpush.msra.mxu0 %v477
    %1078 = vmatpush.msra.mxu0 %v473
    %1079 = vmatpush.msra.mxu0 %v469
    %1080 = vmatpush.msra.mxu0 %v465
    %1081 = vmatpush.msra.mxu0 %v461
    %1082 = vmatpush.msra.mxu0 %v457
    %1083 = vmatpush.msra.mxu0 %v453
    %1084 = vmatpush.msra.mxu0 %v449
    %1085 = vmatpush.msra.mxu0 %v445
    %1086 = vmatpush.msra.mxu0 %v441
    %1087 = vmatpush.msra.mxu0 %v437
    %1088 = vmatpush.msra.mxu0 %v433
    %1089 = vmatmul.f32.gmra.mxu0 %v1007
    %v1090 = vpop.f32.mrf.mxu0
    %v1091 = vadd.f32 %v1012, %v1090
    %1092 = vdwg.mxu0
    %v1093 = vmul.f32 %v1031, 0.5
    %v1094 = vtanh.pop %v1093
    %v1095 = vmul.f32 %v1094, 0.5
    %v1096 = vadd.f32 %v1095, 0.5
    %v1097 = vmul.f32 %v1051, 0.5
    %v1098 = vtanh.pop %v1097
    %v1099 = vmul.f32 %v1098, 0.5
    %v1100 = vadd.f32 %v1099, 0.5
    %v1101 = vtanh.pop %v1071
    %v1102 = vmul.f32 %v1091, 0.5
    %v1103 = vtanh.pop %v1102
    %v1104 = vmul.f32 %v1103, 0.5
    %v1105 = vadd.f32 %v1104, 0.5
    %v1106 = vmul.f32 %v1100, %v1005
    %v1107 = vmul.f32 %v1096, %v1101
    %v1108 = vadd.f32 %v1106, %v1107
    %v1109 = vtanh.pop %v1108
    %v1110 = vmul.f32 %v1105, %v1109
    %1111 = vst [vmem:[#allocation13 + $0x28] sm:$0xff] %v1110
    %v1112 = vld [vmem:[#allocation2 + $0xc0] sm:$0xff]
    %v1113 = vld [vmem:[#allocation2 + $0xc8] sm:$0xff]
    %v1114 = vld [vmem:[#allocation2 + $0xd0] sm:$0xff]
    %v1115 = vld [vmem:[#allocation2 + $0xd8] sm:$0xff]
    %1116 = vmatpush.msra.mxu0 %v490
    %1117 = vmatpush.msra.mxu0 %v486
    %1118 = vmatpush.msra.mxu0 %v482
    %1119 = vmatpush.msra.mxu0 %v478
    %1120 = vmatpush.msra.mxu0 %v474
    %1121 = vmatpush.msra.mxu0 %v470
    %1122 = vmatpush.msra.mxu0 %v466
    %1123 = vmatpush.msra.mxu0 %v462
    %1124 = vmatpush.msra.mxu0 %v458
    %1125 = vmatpush.msra.mxu0 %v454
    %1126 = vmatpush.msra.mxu0 %v450
    %1127 = vmatpush.msra.mxu0 %v446
    %1128 = vmatpush.msra.mxu0 %v442
    %1129 = vmatpush.msra.mxu0 %v438
    %1130 = vmatpush.msra.mxu0 %v434
    %1131 = vmatpush.msra.mxu0 %v430
    %1132 = vmatmul.f32.gmra.mxu0 %v1110
    %v1133 = vpop.f32.mrf.mxu0
    %v1134 = vadd.f32 %v1112, %v1133
    %1135 = vdwg.mxu0
    %1136 = vmatpush.msra.mxu0 %v491
    %1137 = vmatpush.msra.mxu0 %v487
    %1138 = vmatpush.msra.mxu0 %v483
    %1139 = vmatpush.msra.mxu0 %v479
    %1140 = vmatpush.msra.mxu0 %v475
    %1141 = vmatpush.msra.mxu0 %v471
    %1142 = vmatpush.msra.mxu0 %v467
    %1143 = vmatpush.msra.mxu0 %v463
    %1144 = vmatpush.msra.mxu0 %v459
    %1145 = vmatpush.msra.mxu0 %v455
    %1146 = vmatpush.msra.mxu0 %v451
    %1147 = vmatpush.msra.mxu0 %v447
    %1148 = vmatpush.msra.mxu0 %v443
    %1149 = vmatpush.msra.mxu0 %v439
    %1150 = vmatpush.msra.mxu0 %v435
    %1151 = vmatpush.msra.mxu0 %v431
    %1152 = vmatmul.f32.gmra.mxu0 %v1110
    %v1153 = vpop.f32.mrf.mxu0
    %v1154 = vadd.f32 %v1113, %v1153
    %1155 = vdwg.mxu0
    %1156 = vmatpush.msra.mxu0 %v492
    %1157 = vmatpush.msra.mxu0 %v488
    %1158 = vmatpush.msra.mxu0 %v484
    %1159 = vmatpush.msra.mxu0 %v480
    %1160 = vmatpush.msra.mxu0 %v476
    %1161 = vmatpush.msra.mxu0 %v472
    %1162 = vmatpush.msra.mxu0 %v468
    %1163 = vmatpush.msra.mxu0 %v464
    %1164 = vmatpush.msra.mxu0 %v460
    %1165 = vmatpush.msra.mxu0 %v456
    %1166 = vmatpush.msra.mxu0 %v452
    %1167 = vmatpush.msra.mxu0 %v448
    %1168 = vmatpush.msra.mxu0 %v444
    %1169 = vmatpush.msra.mxu0 %v440
    %1170 = vmatpush.msra.mxu0 %v436
    %1171 = vmatpush.msra.mxu0 %v432
    %1172 = vmatmul.f32.gmra.mxu0 %v1110
    %v1173 = vpop.f32.mrf.mxu0
    %v1174 = vadd.f32 %v1114, %v1173
    %1175 = vdwg.mxu0
    %1176 = vmatpush.msra.mxu0 %v493
    %1177 = vmatpush.msra.mxu0 %v489
    %1178 = vmatpush.msra.mxu0 %v485
    %1179 = vmatpush.msra.mxu0 %v481
    %1180 = vmatpush.msra.mxu0 %v477
    %1181 = vmatpush.msra.mxu0 %v473
    %1182 = vmatpush.msra.mxu0 %v469
    %1183 = vmatpush.msra.mxu0 %v465
    %1184 = vmatpush.msra.mxu0 %v461
    %1185 = vmatpush.msra.mxu0 %v457
    %1186 = vmatpush.msra.mxu0 %v453
    %1187 = vmatpush.msra.mxu0 %v449
    %1188 = vmatpush.msra.mxu0 %v445
    %1189 = vmatpush.msra.mxu0 %v441
    %1190 = vmatpush.msra.mxu0 %v437
    %1191 = vmatpush.msra.mxu0 %v433
    %1192 = vmatmul.f32.gmra.mxu0 %v1110
    %v1193 = vpop.f32.mrf.mxu0
    %v1194 = vadd.f32 %v1115, %v1193
    %1195 = vdwg.mxu0
    %v1196 = vmul.f32 %v1134, 0.5
    %v1197 = vtanh.pop %v1196
    %v1198 = vmul.f32 %v1197, 0.5
    %v1199 = vadd.f32 %v1198, 0.5
    %v1200 = vmul.f32 %v1154, 0.5
    %v1201 = vtanh.pop %v1200
    %v1202 = vmul.f32 %v1201, 0.5
    %v1203 = vadd.f32 %v1202, 0.5
    %v1204 = vtanh.pop %v1174
    %v1205 = vmul.f32 %v1194, 0.5
    %v1206 = vtanh.pop %v1205
    %v1207 = vmul.f32 %v1206, 0.5
    %v1208 = vadd.f32 %v1207, 0.5
    %v1209 = vmul.f32 %v1203, %v1108
    %v1210 = vmul.f32 %v1199, %v1204
    %v1211 = vadd.f32 %v1209, %v1210
    %v1212 = vtanh.pop %v1211
    %v1213 = vmul.f32 %v1208, %v1212
    %1214 = vst [vmem:[#allocation13 + $0x30] sm:$0xff] %v1213
    %v1215 = vld [vmem:[#allocation2 + $0xe0] sm:$0xff]
    %v1216 = vld [vmem:[#allocation2 + $0xe8] sm:$0xff]
    %v1217 = vld [vmem:[#allocation2 + $0xf0] sm:$0xff]
    %v1218 = vld [vmem:[#allocation2 + $0xf8] sm:$0xff]
    %1219 = vmatpush.msra.mxu0 %v490
    %1220 = vmatpush.msra.mxu0 %v486
    %1221 = vmatpush.msra.mxu0 %v482
    %1222 = vmatpush.msra.mxu0 %v478
    %1223 = vmatpush.msra.mxu0 %v474
    %1224 = vmatpush.msra.mxu0 %v470
    %1225 = vmatpush.msra.mxu0 %v466
    %1226 = vmatpush.msra.mxu0 %v462
    %1227 = vmatpush.msra.mxu0 %v458
    %1228 = vmatpush.msra.mxu0 %v454
    %1229 = vmatpush.msra.mxu0 %v450
    %1230 = vmatpush.msra.mxu0 %v446
    %1231 = vmatpush.msra.mxu0 %v442
    %1232 = vmatpush.msra.mxu0 %v438
    %1233 = vmatpush.msra.mxu0 %v434
    %1234 = vmatpush.msra.mxu0 %v430
    %1235 = vmatmul.f32.gmra.mxu0 %v1213
    %v1236 = vpop.f32.mrf.mxu0
    %v1237 = vadd.f32 %v1215, %v1236
    %1238 = vdwg.mxu0
    %1239 = vmatpush.msra.mxu0 %v491
    %1240 = vmatpush.msra.mxu0 %v487
    %1241 = vmatpush.msra.mxu0 %v483
    %1242 = vmatpush.msra.mxu0 %v479
    %1243 = vmatpush.msra.mxu0 %v475
    %1244 = vmatpush.msra.mxu0 %v471
    %1245 = vmatpush.msra.mxu0 %v467
    %1246 = vmatpush.msra.mxu0 %v463
    %1247 = vmatpush.msra.mxu0 %v459
    %1248 = vmatpush.msra.mxu0 %v455
    %1249 = vmatpush.msra.mxu0 %v451
    %1250 = vmatpush.msra.mxu0 %v447
    %1251 = vmatpush.msra.mxu0 %v443
    %1252 = vmatpush.msra.mxu0 %v439
    %1253 = vmatpush.msra.mxu0 %v435
    %1254 = vmatpush.msra.mxu0 %v431
    %1255 = vmatmul.f32.gmra.mxu0 %v1213
    %v1256 = vpop.f32.mrf.mxu0
    %v1257 = vadd.f32 %v1216, %v1256
    %1258 = vdwg.mxu0
    %1259 = vmatpush.msra.mxu0 %v492
    %1260 = vmatpush.msra.mxu0 %v488
    %1261 = vmatpush.msra.mxu0 %v484
    %1262 = vmatpush.msra.mxu0 %v480
    %1263 = vmatpush.msra.mxu0 %v476
    %1264 = vmatpush.msra.mxu0 %v472
    %1265 = vmatpush.msra.mxu0 %v468
    %1266 = vmatpush.msra.mxu0 %v464
    %1267 = vmatpush.msra.mxu0 %v460
    %1268 = vmatpush.msra.mxu0 %v456
    %1269 = vmatpush.msra.mxu0 %v452
    %1270 = vmatpush.msra.mxu0 %v448
    %1271 = vmatpush.msra.mxu0 %v444
    %1272 = vmatpush.msra.mxu0 %v440
    %1273 = vmatpush.msra.mxu0 %v436
    %1274 = vmatpush.msra.mxu0 %v432
    %1275 = vmatmul.f32.gmra.mxu0 %v1213
    %v1276 = vpop.f32.mrf.mxu0
    %v1277 = vadd.f32 %v1217, %v1276
    %1278 = vdwg.mxu0
    %1279 = vmatpush.msra.mxu0 %v493
    %1280 = vmatpush.msra.mxu0 %v489
    %1281 = vmatpush.msra.mxu0 %v485
    %1282 = vmatpush.msra.mxu0 %v481
    %1283 = vmatpush.msra.mxu0 %v477
    %1284 = vmatpush.msra.mxu0 %v473
    %1285 = vmatpush.msra.mxu0 %v469
    %1286 = vmatpush.msra.mxu0 %v465
    %1287 = vmatpush.msra.mxu0 %v461
    %1288 = vmatpush.msra.mxu0 %v457
    %1289 = vmatpush.msra.mxu0 %v453
    %1290 = vmatpush.msra.mxu0 %v449
    %1291 = vmatpush.msra.mxu0 %v445
    %1292 = vmatpush.msra.mxu0 %v441
    %1293 = vmatpush.msra.mxu0 %v437
    %1294 = vmatpush.msra.mxu0 %v433
    %1295 = vmatmul.f32.gmra.mxu0 %v1213
    %v1296 = vpop.f32.mrf.mxu0
    %v1297 = vadd.f32 %v1218, %v1296
    %1298 = vdwg.mxu0
    %v1299 = vmul.f32 %v1237, 0.5
    %v1300 = vtanh.pop %v1299
    %v1301 = vmul.f32 %v1300, 0.5
    %v1302 = vadd.f32 %v1301, 0.5
    %v1303 = vmul.f32 %v1257, 0.5
    %v1304 = vtanh.pop %v1303
    %v1305 = vmul.f32 %v1304, 0.5
    %v1306 = vadd.f32 %v1305, 0.5
    %v1307 = vtanh.pop %v1277
    %v1308 = vmul.f32 %v1297, 0.5
    %v1309 = vtanh.pop %v1308
    %v1310 = vmul.f32 %v1309, 0.5
    %v1311 = vadd.f32 %v1310, 0.5
    %v1312 = vmul.f32 %v1306, %v1211
    %v1313 = vmul.f32 %v1302, %v1307
    %v1314 = vadd.f32 %v1312, %v1313
    %v1315 = vtanh.pop %v1314
    %v1316 = vmul.f32 %v1311, %v1315
    %1317 = vst [vmem:[#allocation13 + $0x38] sm:$0xff] %v1316
    %v1318 = vld [vmem:[#allocation2 + $0x100] sm:$0xff]
    %v1319 = vld [vmem:[#allocation2 + $0x108] sm:$0xff]
    %v1320 = vld [vmem:[#allocation2 + $0x110] sm:$0xff]
    %v1321 = vld [vmem:[#allocation2 + $0x118] sm:$0xff]
    %1322 = vmatpush.msra.mxu0 %v490
    %1323 = vmatpush.msra.mxu0 %v486
    %1324 = vmatpush.msra.mxu0 %v482
    %1325 = vmatpush.msra.mxu0 %v478
    %1326 = vmatpush.msra.mxu0 %v474
    %1327 = vmatpush.msra.mxu0 %v470
    %1328 = vmatpush.msra.mxu0 %v466
    %1329 = vmatpush.msra.mxu0 %v462
    %1330 = vmatpush.msra.mxu0 %v458
    %1331 = vmatpush.msra.mxu0 %v454
    %1332 = vmatpush.msra.mxu0 %v450
    %1333 = vmatpush.msra.mxu0 %v446
    %1334 = vmatpush.msra.mxu0 %v442
    %1335 = vmatpush.msra.mxu0 %v438
    %1336 = vmatpush.msra.mxu0 %v434
    %1337 = vmatpush.msra.mxu0 %v430
    %1338 = vmatmul.f32.gmra.mxu0 %v1316
    %v1339 = vpop.f32.mrf.mxu0
    %v1340 = vadd.f32 %v1318, %v1339
    %1341 = vdwg.mxu0
    %1342 = vmatpush.msra.mxu0 %v491
    %1343 = vmatpush.msra.mxu0 %v487
    %1344 = vmatpush.msra.mxu0 %v483
    %1345 = vmatpush.msra.mxu0 %v479
    %1346 = vmatpush.msra.mxu0 %v475
    %1347 = vmatpush.msra.mxu0 %v471
    %1348 = vmatpush.msra.mxu0 %v467
    %1349 = vmatpush.msra.mxu0 %v463
    %1350 = vmatpush.msra.mxu0 %v459
    %1351 = vmatpush.msra.mxu0 %v455
    %1352 = vmatpush.msra.mxu0 %v451
    %1353 = vmatpush.msra.mxu0 %v447
    %1354 = vmatpush.msra.mxu0 %v443
    %1355 = vmatpush.msra.mxu0 %v439
    %1356 = vmatpush.msra.mxu0 %v435
    %1357 = vmatpush.msra.mxu0 %v431
    %1358 = vmatmul.f32.gmra.mxu0 %v1316
    %v1359 = vpop.f32.mrf.mxu0
    %v1360 = vadd.f32 %v1319, %v1359
    %1361 = vdwg.mxu0
    %1362 = vmatpush.msra.mxu0 %v492
    %1363 = vmatpush.msra.mxu0 %v488
    %1364 = vmatpush.msra.mxu0 %v484
    %1365 = vmatpush.msra.mxu0 %v480
    %1366 = vmatpush.msra.mxu0 %v476
    %1367 = vmatpush.msra.mxu0 %v472
    %1368 = vmatpush.msra.mxu0 %v468
    %1369 = vmatpush.msra.mxu0 %v464
    %1370 = vmatpush.msra.mxu0 %v460
    %1371 = vmatpush.msra.mxu0 %v456
    %1372 = vmatpush.msra.mxu0 %v452
    %1373 = vmatpush.msra.mxu0 %v448
    %1374 = vmatpush.msra.mxu0 %v444
    %1375 = vmatpush.msra.mxu0 %v440
    %1376 = vmatpush.msra.mxu0 %v436
    %1377 = vmatpush.msra.mxu0 %v432
    %1378 = vmatmul.f32.gmra.mxu0 %v1316
    %v1379 = vpop.f32.mrf.mxu0
    %v1380 = vadd.f32 %v1320, %v1379
    %1381 = vdwg.mxu0
    %1382 = vmatpush.msra.mxu0 %v493
    %1383 = vmatpush.msra.mxu0 %v489
    %1384 = vmatpush.msra.mxu0 %v485
    %1385 = vmatpush.msra.mxu0 %v481
    %1386 = vmatpush.msra.mxu0 %v477
    %1387 = vmatpush.msra.mxu0 %v473
    %1388 = vmatpush.msra.mxu0 %v469
    %1389 = vmatpush.msra.mxu0 %v465
    %1390 = vmatpush.msra.mxu0 %v461
    %1391 = vmatpush.msra.mxu0 %v457
    %1392 = vmatpush.msra.mxu0 %v453
    %1393 = vmatpush.msra.mxu0 %v449
    %1394 = vmatpush.msra.mxu0 %v445
    %1395 = vmatpush.msra.mxu0 %v441
    %1396 = vmatpush.msra.mxu0 %v437
    %1397 = vmatpush.msra.mxu0 %v433
    %1398 = vmatmul.f32.gmra.mxu0 %v1316
    %v1399 = vpop.f32.mrf.mxu0
    %v1400 = vadd.f32 %v1321, %v1399
    %1401 = vdwg.mxu0
    %v1402 = vmul.f32 %v1340, 0.5
    %v1403 = vtanh.pop %v1402
    %v1404 = vmul.f32 %v1403, 0.5
    %v1405 = vadd.f32 %v1404, 0.5
    %v1406 = vmul.f32 %v1360, 0.5
    %v1407 = vtanh.pop %v1406
    %v1408 = vmul.f32 %v1407, 0.5
    %v1409 = vadd.f32 %v1408, 0.5
    %v1410 = vtanh.pop %v1380
    %v1411 = vmul.f32 %v1400, 0.5
    %v1412 = vtanh.pop %v1411
    %v1413 = vmul.f32 %v1412, 0.5
    %v1414 = vadd.f32 %v1413, 0.5
    %v1415 = vmul.f32 %v1409, %v1314
    %v1416 = vmul.f32 %v1405, %v1410
    %v1417 = vadd.f32 %v1415, %v1416
    %v1418 = vtanh.pop %v1417
    %v1419 = vmul.f32 %v1414, %v1418
    %1420 = vst [vmem:[#allocation13 + $0x40] sm:$0xff] %v1419
    %v1421 = vld [vmem:[#allocation2 + $0x120] sm:$0xff]
    %v1422 = vld [vmem:[#allocation2 + $0x128] sm:$0xff]
    %v1423 = vld [vmem:[#allocation2 + $0x130] sm:$0xff]
    %v1424 = vld [vmem:[#allocation2 + $0x138] sm:$0xff]
    %1425 = vmatpush.msra.mxu0 %v490
    %1426 = vmatpush.msra.mxu0 %v486
    %1427 = vmatpush.msra.mxu0 %v482
    %1428 = vmatpush.msra.mxu0 %v478
    %1429 = vmatpush.msra.mxu0 %v474
    %1430 = vmatpush.msra.mxu0 %v470
    %1431 = vmatpush.msra.mxu0 %v466
    %1432 = vmatpush.msra.mxu0 %v462
    %1433 = vmatpush.msra.mxu0 %v458
    %1434 = vmatpush.msra.mxu0 %v454
    %1435 = vmatpush.msra.mxu0 %v450
    %1436 = vmatpush.msra.mxu0 %v446
    %1437 = vmatpush.msra.mxu0 %v442
    %1438 = vmatpush.msra.mxu0 %v438
    %1439 = vmatpush.msra.mxu0 %v434
    %1440 = vmatpush.msra.mxu0 %v430
    %1441 = vmatmul.f32.gmra.mxu0 %v1419
    %v1442 = vpop.f32.mrf.mxu0
    %v1443 = vadd.f32 %v1421, %v1442
    %1444 = vdwg.mxu0
    %1445 = vmatpush.msra.mxu0 %v491
    %1446 = vmatpush.msra.mxu0 %v487
    %1447 = vmatpush.msra.mxu0 %v483
    %1448 = vmatpush.msra.mxu0 %v479
    %1449 = vmatpush.msra.mxu0 %v475
    %1450 = vmatpush.msra.mxu0 %v471
    %1451 = vmatpush.msra.mxu0 %v467
    %1452 = vmatpush.msra.mxu0 %v463
    %1453 = vmatpush.msra.mxu0 %v459
    %1454 = vmatpush.msra.mxu0 %v455
    %1455 = vmatpush.msra.mxu0 %v451
    %1456 = vmatpush.msra.mxu0 %v447
    %1457 = vmatpush.msra.mxu0 %v443
    %1458 = vmatpush.msra.mxu0 %v439
    %1459 = vmatpush.msra.mxu0 %v435
    %1460 = vmatpush.msra.mxu0 %v431
    %1461 = vmatmul.f32.gmra.mxu0 %v1419
    %v1462 = vpop.f32.mrf.mxu0
    %v1463 = vadd.f32 %v1422, %v1462
    %1464 = vdwg.mxu0
    %1465 = vmatpush.msra.mxu0 %v492
    %1466 = vmatpush.msra.mxu0 %v488
    %1467 = vmatpush.msra.mxu0 %v484
    %1468 = vmatpush.msra.mxu0 %v480
    %1469 = vmatpush.msra.mxu0 %v476
    %1470 = vmatpush.msra.mxu0 %v472
    %1471 = vmatpush.msra.mxu0 %v468
    %1472 = vmatpush.msra.mxu0 %v464
    %1473 = vmatpush.msra.mxu0 %v460
    %1474 = vmatpush.msra.mxu0 %v456
    %1475 = vmatpush.msra.mxu0 %v452
    %1476 = vmatpush.msra.mxu0 %v448
    %1477 = vmatpush.msra.mxu0 %v444
    %1478 = vmatpush.msra.mxu0 %v440
    %1479 = vmatpush.msra.mxu0 %v436
    %1480 = vmatpush.msra.mxu0 %v432
    %1481 = vmatmul.f32.gmra.mxu0 %v1419
    %v1482 = vpop.f32.mrf.mxu0
    %v1483 = vadd.f32 %v1423, %v1482
    %1484 = vdwg.mxu0
    %1485 = vmatpush.msra.mxu0 %v493
    %1486 = vmatpush.msra.mxu0 %v489
    %1487 = vmatpush.msra.mxu0 %v485
    %1488 = vmatpush.msra.mxu0 %v481
    %1489 = vmatpush.msra.mxu0 %v477
    %1490 = vmatpush.msra.mxu0 %v473
    %1491 = vmatpush.msra.mxu0 %v469
    %1492 = vmatpush.msra.mxu0 %v465
    %1493 = vmatpush.msra.mxu0 %v461
    %1494 = vmatpush.msra.mxu0 %v457
    %1495 = vmatpush.msra.mxu0 %v453
    %1496 = vmatpush.msra.mxu0 %v449
    %1497 = vmatpush.msra.mxu0 %v445
    %1498 = vmatpush.msra.mxu0 %v441
    %1499 = vmatpush.msra.mxu0 %v437
    %1500 = vmatpush.msra.mxu0 %v433
    %1501 = vmatmul.f32.gmra.mxu0 %v1419
    %v1502 = vpop.f32.mrf.mxu0
    %v1503 = vadd.f32 %v1424, %v1502
    %1504 = vdwg.mxu0
    %v1505 = vmul.f32 %v1443, 0.5
    %v1506 = vtanh.pop %v1505
    %v1507 = vmul.f32 %v1506, 0.5
    %v1508 = vadd.f32 %v1507, 0.5
    %v1509 = vmul.f32 %v1463, 0.5
    %v1510 = vtanh.pop %v1509
    %v1511 = vmul.f32 %v1510, 0.5
    %v1512 = vadd.f32 %v1511, 0.5
    %v1513 = vtanh.pop %v1483
    %v1514 = vmul.f32 %v1503, 0.5
    %v1515 = vtanh.pop %v1514
    %v1516 = vmul.f32 %v1515, 0.5
    %v1517 = vadd.f32 %v1516, 0.5
    %v1518 = vmul.f32 %v1512, %v1417
    %v1519 = vmul.f32 %v1508, %v1513
    %v1520 = vadd.f32 %v1518, %v1519
    %v1521 = vtanh.pop %v1520
    %v1522 = vmul.f32 %v1517, %v1521
    %1523 = vst [vmem:[#allocation13 + $0x48] sm:$0xff] %v1522
    %v1524 = vld [vmem:[#allocation2 + $0x140] sm:$0xff]
    %v1525 = vld [vmem:[#allocation2 + $0x148] sm:$0xff]
    %v1526 = vld [vmem:[#allocation2 + $0x150] sm:$0xff]
    %v1527 = vld [vmem:[#allocation2 + $0x158] sm:$0xff]
    %1528 = vmatpush.msra.mxu0 %v490
    %1529 = vmatpush.msra.mxu0 %v486
    %1530 = vmatpush.msra.mxu0 %v482
    %1531 = vmatpush.msra.mxu0 %v478
    %1532 = vmatpush.msra.mxu0 %v474
    %1533 = vmatpush.msra.mxu0 %v470
    %1534 = vmatpush.msra.mxu0 %v466
    %1535 = vmatpush.msra.mxu0 %v462
    %1536 = vmatpush.msra.mxu0 %v458
    %1537 = vmatpush.msra.mxu0 %v454
    %1538 = vmatpush.msra.mxu0 %v450
    %1539 = vmatpush.msra.mxu0 %v446
    %1540 = vmatpush.msra.mxu0 %v442
    %1541 = vmatpush.msra.mxu0 %v438
    %1542 = vmatpush.msra.mxu0 %v434
    %1543 = vmatpush.msra.mxu0 %v430
    %1544 = vmatmul.f32.gmra.mxu0 %v1522
    %v1545 = vpop.f32.mrf.mxu0
    %v1546 = vadd.f32 %v1524, %v1545
    %1547 = vdwg.mxu0
    %1548 = vmatpush.msra.mxu0 %v491
    %1549 = vmatpush.msra.mxu0 %v487
    %1550 = vmatpush.msra.mxu0 %v483
    %1551 = vmatpush.msra.mxu0 %v479
    %1552 = vmatpush.msra.mxu0 %v475
    %1553 = vmatpush.msra.mxu0 %v471
    %1554 = vmatpush.msra.mxu0 %v467
    %1555 = vmatpush.msra.mxu0 %v463
    %1556 = vmatpush.msra.mxu0 %v459
    %1557 = vmatpush.msra.mxu0 %v455
    %1558 = vmatpush.msra.mxu0 %v451
    %1559 = vmatpush.msra.mxu0 %v447
    %1560 = vmatpush.msra.mxu0 %v443
    %1561 = vmatpush.msra.mxu0 %v439
    %1562 = vmatpush.msra.mxu0 %v435
    %1563 = vmatpush.msra.mxu0 %v431
    %1564 = vmatmul.f32.gmra.mxu0 %v1522
    %v1565 = vpop.f32.mrf.mxu0
    %v1566 = vadd.f32 %v1525, %v1565
    %1567 = vdwg.mxu0
    %1568 = vmatpush.msra.mxu0 %v492
    %1569 = vmatpush.msra.mxu0 %v488
    %1570 = vmatpush.msra.mxu0 %v484
    %1571 = vmatpush.msra.mxu0 %v480
    %1572 = vmatpush.msra.mxu0 %v476
    %1573 = vmatpush.msra.mxu0 %v472
    %1574 = vmatpush.msra.mxu0 %v468
    %1575 = vmatpush.msra.mxu0 %v464
    %1576 = vmatpush.msra.mxu0 %v460
    %1577 = vmatpush.msra.mxu0 %v456
    %1578 = vmatpush.msra.mxu0 %v452
    %1579 = vmatpush.msra.mxu0 %v448
    %1580 = vmatpush.msra.mxu0 %v444
    %1581 = vmatpush.msra.mxu0 %v440
    %1582 = vmatpush.msra.mxu0 %v436
    %1583 = vmatpush.msra.mxu0 %v432
    %1584 = vmatmul.f32.gmra.mxu0 %v1522
    %v1585 = vpop.f32.mrf.mxu0
    %v1586 = vadd.f32 %v1526, %v1585
    %1587 = vdwg.mxu0
    %1588 = vmatpush.msra.mxu0 %v493
    %1589 = vmatpush.msra.mxu0 %v489
    %1590 = vmatpush.msra.mxu0 %v485
    %1591 = vmatpush.msra.mxu0 %v481
    %1592 = vmatpush.msra.mxu0 %v477
    %1593 = vmatpush.msra.mxu0 %v473
    %1594 = vmatpush.msra.mxu0 %v469
    %1595 = vmatpush.msra.mxu0 %v465
    %1596 = vmatpush.msra.mxu0 %v461
    %1597 = vmatpush.msra.mxu0 %v457
    %1598 = vmatpush.msra.mxu0 %v453
    %1599 = vmatpush.msra.mxu0 %v449
    %1600 = vmatpush.msra.mxu0 %v445
    %1601 = vmatpush.msra.mxu0 %v441
    %1602 = vmatpush.msra.mxu0 %v437
    %1603 = vmatpush.msra.mxu0 %v433
    %1604 = vmatmul.f32.gmra.mxu0 %v1522
    %v1605 = vpop.f32.mrf.mxu0
    %v1606 = vadd.f32 %v1527, %v1605
    %1607 = vdwg.mxu0
    %v1608 = vmul.f32 %v1546, 0.5
    %v1609 = vtanh.pop %v1608
    %v1610 = vmul.f32 %v1609, 0.5
    %v1611 = vadd.f32 %v1610, 0.5
    %v1612 = vmul.f32 %v1566, 0.5
    %v1613 = vtanh.pop %v1612
    %v1614 = vmul.f32 %v1613, 0.5
    %v1615 = vadd.f32 %v1614, 0.5
    %v1616 = vtanh.pop %v1586
    %v1617 = vmul.f32 %v1606, 0.5
    %v1618 = vtanh.pop %v1617
    %v1619 = vmul.f32 %v1618, 0.5
    %v1620 = vadd.f32 %v1619, 0.5
    %v1621 = vmul.f32 %v1615, %v1520
    %v1622 = vmul.f32 %v1611, %v1616
    %v1623 = vadd.f32 %v1621, %v1622
    %v1624 = vtanh.pop %v1623
    %v1625 = vmul.f32 %v1620, %v1624
    %1626 = vst [vmem:[#allocation13 + $0x50] sm:$0xff] %v1625
    %v1627 = vld [vmem:[#allocation2 + $0x160] sm:$0xff]
    %v1628 = vld [vmem:[#allocation2 + $0x168] sm:$0xff]
    %v1629 = vld [vmem:[#allocation2 + $0x170] sm:$0xff]
    %v1630 = vld [vmem:[#allocation2 + $0x178] sm:$0xff]
    %1631 = vmatpush.msra.mxu0 %v490
    %1632 = vmatpush.msra.mxu0 %v486
    %1633 = vmatpush.msra.mxu0 %v482
    %1634 = vmatpush.msra.mxu0 %v478
    %1635 = vmatpush.msra.mxu0 %v474
    %1636 = vmatpush.msra.mxu0 %v470
    %1637 = vmatpush.msra.mxu0 %v466
    %1638 = vmatpush.msra.mxu0 %v462
    %1639 = vmatpush.msra.mxu0 %v458
    %1640 = vmatpush.msra.mxu0 %v454
    %1641 = vmatpush.msra.mxu0 %v450
    %1642 = vmatpush.msra.mxu0 %v446
    %1643 = vmatpush.msra.mxu0 %v442
    %1644 = vmatpush.msra.mxu0 %v438
    %1645 = vmatpush.msra.mxu0 %v434
    %1646 = vmatpush.msra.mxu0 %v430
    %1647 = vmatmul.f32.gmra.mxu0 %v1625
    %v1648 = vpop.f32.mrf.mxu0
    %v1649 = vadd.f32 %v1627, %v1648
    %1650 = vdwg.mxu0
    %1651 = vmatpush.msra.mxu0 %v491
    %1652 = vmatpush.msra.mxu0 %v487
    %1653 = vmatpush.msra.mxu0 %v483
    %1654 = vmatpush.msra.mxu0 %v479
    %1655 = vmatpush.msra.mxu0 %v475
    %1656 = vmatpush.msra.mxu0 %v471
    %1657 = vmatpush.msra.mxu0 %v467
    %1658 = vmatpush.msra.mxu0 %v463
    %1659 = vmatpush.msra.mxu0 %v459
    %1660 = vmatpush.msra.mxu0 %v455
    %1661 = vmatpush.msra.mxu0 %v451
    %1662 = vmatpush.msra.mxu0 %v447
    %1663 = vmatpush.msra.mxu0 %v443
    %1664 = vmatpush.msra.mxu0 %v439
    %1665 = vmatpush.msra.mxu0 %v435
    %1666 = vmatpush.msra.mxu0 %v431
    %1667 = vmatmul.f32.gmra.mxu0 %v1625
    %v1668 = vpop.f32.mrf.mxu0
    %v1669 = vadd.f32 %v1628, %v1668
    %1670 = vdwg.mxu0
    %1671 = vmatpush.msra.mxu0 %v492
    %1672 = vmatpush.msra.mxu0 %v488
    %1673 = vmatpush.msra.mxu0 %v484
    %1674 = vmatpush.msra.mxu0 %v480
    %1675 = vmatpush.msra.mxu0 %v476
    %1676 = vmatpush.msra.mxu0 %v472
    %1677 = vmatpush.msra.mxu0 %v468
    %1678 = vmatpush.msra.mxu0 %v464
    %1679 = vmatpush.msra.mxu0 %v460
    %1680 = vmatpush.msra.mxu0 %v456
    %1681 = vmatpush.msra.mxu0 %v452
    %1682 = vmatpush.msra.mxu0 %v448
    %1683 = vmatpush.msra.mxu0 %v444
    %1684 = vmatpush.msra.mxu0 %v440
    %1685 = vmatpush.msra.mxu0 %v436
    %1686 = vmatpush.msra.mxu0 %v432
    %1687 = vmatmul.f32.gmra.mxu0 %v1625
    %v1688 = vpop.f32.mrf.mxu0
    %v1689 = vadd.f32 %v1629, %v1688
    %1690 = vdwg.mxu0
    %1691 = vmatpush.msra.mxu0 %v493
    %1692 = vmatpush.msra.mxu0 %v489
    %1693 = vmatpush.msra.mxu0 %v485
    %1694 = vmatpush.msra.mxu0 %v481
    %1695 = vmatpush.msra.mxu0 %v477
    %1696 = vmatpush.msra.mxu0 %v473
    %1697 = vmatpush.msra.mxu0 %v469
    %1698 = vmatpush.msra.mxu0 %v465
    %1699 = vmatpush.msra.mxu0 %v461
    %1700 = vmatpush.msra.mxu0 %v457
    %1701 = vmatpush.msra.mxu0 %v453
    %1702 = vmatpush.msra.mxu0 %v449
    %1703 = vmatpush.msra.mxu0 %v445
    %1704 = vmatpush.msra.mxu0 %v441
    %1705 = vmatpush.msra.mxu0 %v437
    %1706 = vmatpush.msra.mxu0 %v433
    %1707 = vmatmul.f32.gmra.mxu0 %v1625
    %v1708 = vpop.f32.mrf.mxu0
    %v1709 = vadd.f32 %v1630, %v1708
    %1710 = vdwg.mxu0
    %v1711 = vmul.f32 %v1649, 0.5
    %v1712 = vtanh.pop %v1711
    %v1713 = vmul.f32 %v1712, 0.5
    %v1714 = vadd.f32 %v1713, 0.5
    %v1715 = vmul.f32 %v1669, 0.5
    %v1716 = vtanh.pop %v1715
    %v1717 = vmul.f32 %v1716, 0.5
    %v1718 = vadd.f32 %v1717, 0.5
    %v1719 = vtanh.pop %v1689
    %v1720 = vmul.f32 %v1709, 0.5
    %v1721 = vtanh.pop %v1720
    %v1722 = vmul.f32 %v1721, 0.5
    %v1723 = vadd.f32 %v1722, 0.5
    %v1724 = vmul.f32 %v1718, %v1623
    %v1725 = vmul.f32 %v1714, %v1719
    %v1726 = vadd.f32 %v1724, %v1725
    %v1727 = vtanh.pop %v1726
    %v1728 = vmul.f32 %v1723, %v1727
    %1729 = vst [vmem:[#allocation13 + $0x58] sm:$0xff] %v1728
    %v1730 = vld [vmem:[#allocation13] sm:$0xff]
    %v1731 = vld [vmem:[#allocation13 + $0x8] sm:$0xff]
    %v1732 = vld [vmem:[#allocation13 + $0x10] sm:$0xff]
    %v1733 = vld [vmem:[#allocation13 + $0x18] sm:$0xff]
    %v1734 = vld [vmem:[#allocation13 + $0x20] sm:$0xff]
    %v1735 = vld [vmem:[#allocation13 + $0x28] sm:$0xff]
    %v1736 = vld [vmem:[#allocation13 + $0x30] sm:$0xff]
    %v1737 = vld [vmem:[#allocation13 + $0x38] sm:$0xff]
    %v1738 = vld [vmem:[#allocation13 + $0x40] sm:$0xff]
    %v1739 = vld [vmem:[#allocation13 + $0x48] sm:$0xff]
    %v1740 = vld [vmem:[#allocation13 + $0x50] sm:$0xff]
    %v1741 = vld [vmem:[#allocation13 + $0x58] sm:$0xff]
    %v1742 = vld [vmem:[#allocation11] sm:$0xff]
    %v1743 = vld [vmem:[#allocation11 + $0x8] sm:$0xff]
    %v1744 = vld [vmem:[#allocation11 + $0x10] sm:$0xff]
    %v1745 = vld [vmem:[#allocation11 + $0x18] sm:$0xff]
    %v1746 = vld [vmem:[#allocation11 + $0x20] sm:$0xff]
    %v1747 = vld [vmem:[#allocation11 + $0x28] sm:$0xff]
    %v1748 = vld [vmem:[#allocation11 + $0x30] sm:$0xff]
    %v1749 = vld [vmem:[#allocation11 + $0x38] sm:$0xff]
    %v1750 = vld [vmem:[#allocation11 + $0x40] sm:$0xff]
    %v1751 = vld [vmem:[#allocation11 + $0x48] sm:$0xff]
    %v1752 = vld [vmem:[#allocation11 + $0x50] sm:$0xff]
    %v1753 = vld [vmem:[#allocation11 + $0x58] sm:$0xff]
    %v1754 = vld [vmem:[#allocation11 + $0x60] sm:$0xff]
    %v1755 = vld [vmem:[#allocation11 + $0x68] sm:$0xff]
    %v1756 = vld [vmem:[#allocation11 + $0x70] sm:$0xff]
    %v1757 = vld [vmem:[#allocation11 + $0x78] sm:$0xff]
    %v1758 = vld [vmem:[%s5] sm:$0x1]
    %v1760 = vperm.slane %v1758, 0
    %1762 = vmatpush.msra.mxu0 %v1757
    %1763 = vmatpush.msra.mxu0 %v1756
    %1764 = vmatpush.msra.mxu0 %v1755
    %1765 = vmatpush.msra.mxu0 %v1754
    %1766 = vmatpush.msra.mxu0 %v1753
    %1767 = vmatpush.msra.mxu0 %v1752
    %1768 = vmatpush.msra.mxu0 %v1751
    %1769 = vmatpush.msra.mxu0 %v1750
    %1770 = vmatpush.msra.mxu0 %v1749
    %1771 = vmatpush.msra.mxu0 %v1748
    %1772 = vmatpush.msra.mxu0 %v1747
    %1773 = vmatpush.msra.mxu0 %v1746
    %1774 = vmatpush.msra.mxu0 %v1745
    %1775 = vmatpush.msra.mxu0 %v1744
    %1776 = vmatpush.msra.mxu0 %v1743
    %1777 = vmatpush.msra.mxu0 %v1742
    %1778 = vmatmul.f32.gmra.mxu0 %v1730
    %v1779 = vpop.f32.mrf.mxu0
    %v1780 = vadd.f32 %v1760, %v1779
    %1781 = vmatmul.f32.gmra.mxu0 %v1731
    %v1782 = vpop.f32.mrf.mxu0
    %v1783 = vadd.f32 %v1760, %v1782
    %1784 = vmatmul.f32.gmra.mxu0 %v1732
    %v1785 = vpop.f32.mrf.mxu0
    %v1786 = vadd.f32 %v1760, %v1785
    %1787 = vmatmul.f32.gmra.mxu0 %v1733
    %v1788 = vpop.f32.mrf.mxu0
    %v1789 = vadd.f32 %v1760, %v1788
    %1790 = vmatmul.f32.gmra.mxu0 %v1734
    %v1791 = vpop.f32.mrf.mxu0
    %v1792 = vadd.f32 %v1760, %v1791
    %1793 = vmatmul.f32.gmra.mxu0 %v1735
    %v1794 = vpop.f32.mrf.mxu0
    %v1795 = vadd.f32 %v1760, %v1794
    %1796 = vmatmul.f32.gmra.mxu0 %v1736
    %v1797 = vpop.f32.mrf.mxu0
    %v1798 = vadd.f32 %v1760, %v1797
    %1799 = vmatmul.f32.gmra.mxu0 %v1737
    %v1800 = vpop.f32.mrf.mxu0
    %v1801 = vadd.f32 %v1760, %v1800
    %1802 = vmatmul.f32.gmra.mxu0 %v1738
    %v1803 = vpop.f32.mrf.mxu0
    %v1804 = vadd.f32 %v1760, %v1803
    %1805 = vmatmul.f32.gmra.mxu0 %v1739
    %v1806 = vpop.f32.mrf.mxu0
    %v1807 = vadd.f32 %v1760, %v1806
    %1808 = vmatmul.f32.gmra.mxu0 %v1740
    %v1809 = vpop.f32.mrf.mxu0
    %v1810 = vadd.f32 %v1760, %v1809
    %1811 = vmatmul.f32.gmra.mxu0 %v1741
    %v1812 = vpop.f32.mrf.mxu0
    %v1813 = vadd.f32 %v1760, %v1812
    %1814 = vdwg.mxu0
    %1815 = vst [vmem:[#allocation12] sm:$0xff] %v1780
    %1816 = vst [vmem:[#allocation12 + $0x8] sm:$0xff] %v1783
    %1817 = vst [vmem:[#allocation12 + $0x10] sm:$0xff] %v1786
    %1818 = vst [vmem:[#allocation12 + $0x18] sm:$0xff] %v1789
    %1819 = vst [vmem:[#allocation12 + $0x20] sm:$0xff] %v1792
    %1820 = vst [vmem:[#allocation12 + $0x28] sm:$0xff] %v1795
    %1821 = vst [vmem:[#allocation12 + $0x30] sm:$0xff] %v1798
    %1822 = vst [vmem:[#allocation12 + $0x38] sm:$0xff] %v1801
    %1823 = vst [vmem:[#allocation12 + $0x40] sm:$0xff] %v1804
    %1824 = vst [vmem:[#allocation12 + $0x48] sm:$0xff] %v1807
    %1825 = vst [vmem:[#allocation12 + $0x50] sm:$0xff] %v1810
    %1826 = vst [vmem:[#allocation12 + $0x58] sm:$0xff] %v1813
    // Predicated region
    $region46: #{midi_lm_forward.1} parent=1 // pred_check
      _
    $region47: #{midi_lm_forward.1} parent=1 // pred_check_branch
      %1828 = sbr.rel (0) target = $region49
    $region48: #{midi_lm_forward.1} parent=1 // pred_region
      %1830 = vsyncadd [#allocation5], 0
      %s1831 = sshll.u32 [#allocation12], 4
      %s1832 = int_to_ptr.vmem [resolvable:$true] %s1831
      %s1833 = sshll.u32 %s6, 4
      %s1834 = int_to_ptr.hbm [resolvable:$true] %s1833
      %1839 = dma.vmem_to_hbm [thread:$0]  %s1832, 1536, %s1834, [#allocation5], 128, 128, 8
    $region49: #{midi_lm_forward.1} parent=1 // pred_fallthru
      _
    // Predicated region
    $region50: #{midi_lm_forward.1} parent=1 // pred_check
      _
    $region51: #{midi_lm_forward.1} parent=1 // pred_check_branch
      %1841 = sbr.rel (0) target = $region53
    $region52: #{midi_lm_forward.1} parent=1 // pred_region
      %1843 = vsyncadd [#allocation14], 0
      %s1844 = sshll.u32 [#allocation13], 4
      %s1845 = int_to_ptr.vmem [resolvable:$true] %s1844
      %s1846 = sshll.u32 %s7, 4
      %s1847 = int_to_ptr.hbm [resolvable:$true] %s1846
      %1852 = dma.vmem_to_hbm [thread:$0]  %s1845, 1536, %s1847, [#allocation14], 128, 128, 8
    $region53: #{midi_lm_forward.1} parent=1 // pred_fallthru
      _
    // Predicated region
    $region54: #{midi_lm_forward.1} parent=1 // pred_check
      _
    $region55: #{midi_lm_forward.1} parent=1 // pred_check_branch
      %1854 = sbr.rel (0) target = $region57
    $region56: #{midi_lm_forward.1} parent=1 // pred_region
      %1856 = dma.done [#allocation5], 1536
    $region57: #{midi_lm_forward.1} parent=1 // pred_fallthru
      _
    // Predicated region
    $region58: #{midi_lm_forward.1} parent=1 // pred_check
      _
    $region59: #{midi_lm_forward.1} parent=1 // pred_check_branch
      %1858 = sbr.rel (0) target = $region61
    $region60: #{midi_lm_forward.1} parent=1 // pred_region
      %1860 = dma.done [#allocation14], 1536
    $region61: #{midi_lm_forward.1} parent=1 // pred_fallthru
      _
    %1861 = vsyncpa [#allocation4], 1
    %1862 = vsyncpa [#allocation7], 1
    %1863 = vsyncpa [#allocation10], 1
    %1864 = vsyncpa [#allocation5], 1
    %1865 = vsyncpa [#allocation14], 1

</llo_original>
